<compile_context>
chip_gen: v7x
topology: tpu7x:2x2x1
jax: 0.10.0
libtpu: 0.0.40
codegen_flags: <defaults>
</compile_context>

<pallas_src>
import functools

import jax
import jax.numpy as jnp
from jax.experimental import pallas as pl
from jax.experimental.pallas import tpu as pltpu


_NEG_INF = -9e15
_LANES = 128
_SUBLANES = 8


# -----------------------------------------------------------------------------
# Parameter packing: one lane-padded VMEM slab, unpacked in-kernel with static
# ref slices.  Done once, outside the jitted forward.
# -----------------------------------------------------------------------------
def _pack_params(arrays):
    blocks, layout, off = [], [], 0
    for arr in arrays:
        r, c = int(arr.shape[0]), int(arr.shape[1])
        rp = -(-r // _SUBLANES) * _SUBLANES
        blk = jnp.zeros((rp, _LANES), jnp.float32).at[:r, :c].set(
            arr.astype(jnp.float32))
        blocks.append(blk)
        layout.append((off, r, c))
        off += rp
    return jnp.concatenate(blocks, axis=0), tuple(layout)


def pack_gagan_params(attn_params, dense_params, out_w, out_b):
    arrays = []
    for (w, a_src, a_dst) in attn_params:
        arrays += [w, a_src, a_dst]
    for (w, b) in dense_params:
        arrays += [w, b]
    # out_w is zero-padded to 128 lanes by the packer (padded logits get 0);
    # out_b is padded with -9e15 so the padded logit lanes vanish under the
    # final softmax -> the kernel can store a full lane-dense [1, 128] row.
    n_out = out_w.shape[1]
    out_b_pad = jnp.full((1, _LANES), _NEG_INF, jnp.float32)
    out_b_pad = out_b_pad.at[:, :n_out].set(out_b.astype(jnp.float32))
    arrays += [out_w, out_b_pad]
    return _pack_params(arrays)


# -----------------------------------------------------------------------------
# Fused forward kernel
# -----------------------------------------------------------------------------
def _make_gagan_kernel(n_nodes, n_attns, n_dense, layout):
    N = n_nodes

    def kernel(x_ref, a_ref, a2_ref, slab_ref, o_ref):
        def param(idx, full_width=False):
            off, r, c = layout[idx]
            if full_width:
                return slab_ref[off:off + r, :]
            return slab_ref[off:off + r, :c]

        x = x_ref[...]                                          # [N, F]

        # Adjacency -> additive softmax bias, branch-packed along lanes
        # ([N, 2N]: cols 0:N = A branch, N:2N = A2 branch).  Built in-kernel.
        adj_cat = jnp.concatenate([a_ref[...], a2_ref[...]], axis=1)
        bias_cat = jnp.where(adj_cat > 0.0, 0.0, _NEG_INF)      # [N, 2N]

        # Node features for both branches row-concatenated: rows 0:N follow A
        # (X1), rows N:2N follow A2 (X2).  Identical at layer 0.
        xcat = jnp.concatenate([x, x], axis=0)                  # [2N, F]

        pi = 0
        for _ in range(n_attns):
            w = param(pi)                                       # [Fin, H]
            a_src = param(pi + 1)                               # [1, H]
            a_dst = param(pi + 2)                               # [1, H]
            pi += 3

            # One batched projection matmul for both branches.
            wh = jnp.dot(xcat, w, preferred_element_type=jnp.float32)  # [2N, H]

            # f_src via VPU multiply + lane reduce; f_dst directly as a [1, 2N]
            # row via a trans-B contraction (no degenerate [H,1] matmuls, no
            # transpose).
            f_src = jnp.sum(wh * a_src, axis=1, keepdims=True)         # [2N, 1]
            f_dst = jnp.einsum("ch,nh->cn", a_dst, wh,
                               preferred_element_type=jnp.float32)     # [1, 2N]

            # Branch-packed attention logits [N, 2N].
            e = jnp.concatenate([f_src[:N] + f_dst[:, :N],
                                 f_src[N:] + f_dst[:, N:]], axis=1)
            e = jnp.maximum(e, 0.2 * e) + bias_cat       # LeakyReLU(0.2) + mask
            # Per-branch row max (softmax must be per-branch), packed exp.
            m1 = jnp.max(e[:, :N], axis=1, keepdims=True)
            m2 = jnp.max(e[:, N:], axis=1, keepdims=True)
            p = jnp.exp(jnp.concatenate([e[:, :N] - m1, e[:, N:] - m2],
                                        axis=1))                        # [N, 2N]
            # Exact normalization (approx reciprocal reserved for class head).
            s1 = jnp.sum(p[:, :N], axis=1, keepdims=True)
            s2 = jnp.sum(p[:, N:], axis=1, keepdims=True)
            # Aggregation must stay per-branch (block structure).
            h1 = jnp.dot(p[:, :N] / s1, wh[:N],
                         preferred_element_type=jnp.float32)
            h2 = jnp.dot(p[:, N:] / s2, wh[N:],
                         preferred_element_type=jnp.float32)
            h = jnp.concatenate([h1, h2], axis=0)                       # [2N, H]
            # ELU; clamp the exp argument so the inactive branch cannot overflow.
            xcat = jnp.where(h > 0.0, h, jnp.exp(jnp.minimum(h, 0.0)) - 1.0)

        # Head: mean over nodes of (X2 - X1), dense ReLU stack, out layer,
        # softmax (dim=1).
        hg = jnp.mean(xcat[N:] - xcat[:N], axis=0, keepdims=True)       # [1, H]
        for _ in range(n_dense):
            w = param(pi)
            b = param(pi + 1)
            pi += 2
            hg = jnp.maximum(
                jnp.dot(hg, w, preferred_element_type=jnp.float32) + b, 0.0)

        # Lane-dense [1, 128] logits: zero-padded out_w columns + -9e15 out_b
        # padding -> padded classes get probability exactly 0.
        out_w = param(pi, full_width=True)                              # [D, 128]
        out_b = param(pi + 1, full_width=True)                          # [1, 128]
        logits = (jnp.dot(hg, out_w, preferred_element_type=jnp.float32)
                  + out_b)
        m = jnp.max(logits, axis=1, keepdims=True)
        z = jnp.exp(logits - m)
        o_ref[...] = z * pl.reciprocal(jnp.sum(z, axis=1, keepdims=True),
                                       approx=True)

    return kernel


# -----------------------------------------------------------------------------
# Wrapper: one pallas_call for the whole forward (eval mode)
# -----------------------------------------------------------------------------
@functools.partial(jax.jit,
                   static_argnames=("layout", "n_attns", "n_dense", "n_out"))
def gagan_forward(x, a, a2, param_slab, *, layout, n_attns, n_dense, n_out):
    n_nodes = x.shape[0]
    vmem = pl.BlockSpec(memory_space=pltpu.MemorySpace.VMEM)
    out_pad = pl.pallas_call(
        _make_gagan_kernel(n_nodes, n_attns, n_dense, layout),
        out_shape=jax.ShapeDtypeStruct((1, _LANES), jnp.float32),
        in_specs=[vmem, vmem, vmem, vmem],
        out_specs=vmem,
        compiler_params=pltpu.CompilerParams(
            vmem_limit_bytes=32 * 1024 * 1024),
    )(x, a, a2, param_slab)
    return out_pad[:, :n_out]


# -----------------------------------------------------------------------------
# Pure-JAX reference (for correctness check)
# -----------------------------------------------------------------------------
def reference_forward(x, a, a2, attn_params, dense_params, out_w, out_b):
    def gat(h, adj, w, a_src, a_dst):
        wh = h @ w
        f_src = wh @ a_src.T                      # [N, 1]
        f_dst = wh @ a_dst.T                      # [N, 1]
        e = jax.nn.leaky_relu(f_src + f_dst.T, 0.2)
        masked = jnp.where(adj > 0, e, _NEG_INF)
        attn = jax.nn.softmax(masked, axis=1)
        return jax.nn.elu(attn @ wh)

    x1, x2 = x, x
    for (w, a_src, a_dst) in attn_params:
        x1 = gat(x1, a, w, a_src, a_dst)
        x2 = gat(x2, a2, w, a_src, a_dst)
    xg = jnp.mean(x2 - x1, axis=0, keepdims=True)
    h = xg
    for (w, b) in dense_params:
        h = jax.nn.relu(h @ w + b)
    logits = h @ out_w + out_b
    return jax.nn.softmax(logits, axis=1)


# -----------------------------------------------------------------------------
# Deterministic parameter construction
# -----------------------------------------------------------------------------
def build_params(key, n_feat, n_attns, dim_attn, n_dense, dim_dense, n_out):
    keys = jax.random.split(key, 2 * n_attns + 2 * n_dense + 2)
    ki = iter(range(len(keys)))

    attn_params = []
    in_f = n_feat
    for _ in range(n_attns):
        w = jax.random.normal(keys[next(ki)], (in_f, dim_attn), jnp.float32) * 0.3
        a_vec = jax.random.normal(keys[next(ki)], (1, 2 * dim_attn), jnp.float32) * 0.3
        # lane-dense [1, H] rows (not [H, 1] columns)
        attn_params.append((w, a_vec[:, :dim_attn], a_vec[:, dim_attn:]))
        in_f = dim_attn

    dense_params = []
    in_d = dim_attn
    for _ in range(n_dense):
        w = jax.random.normal(keys[next(ki)], (in_d, dim_dense), jnp.float32) * 0.2
        b = jax.random.normal(keys[next(ki)], (1, dim_dense), jnp.float32) * 0.05
        dense_params.append((w, b))
        in_d = dim_dense

    out_w = jax.random.normal(keys[next(ki)], (dim_dense, n_out), jnp.float32) * 0.2
    out_b = jax.random.normal(keys[next(ki)], (1, n_out), jnp.float32) * 0.05
    return attn_params, dense_params, out_w, out_b


if __name__ == "__main__":
    # Small shapes: 16 nodes, 8 input feats, 2 attention layers (dim 16),
    # 2 dense layers (dim 32), 4 output classes, dropout (eval -> no-op).
    N, n_feat, n_attns, dim_attn = 16, 8, 2, 16
    n_dense, dim_dense, n_out = 2, 32, 4

    key = jax.random.PRNGKey(0)
    k_x, k_a, k_a2, k_p = jax.random.split(key, 4)

    x = jax.random.normal(k_x, (N, n_feat), jnp.float32)
    # Symmetric-ish binary adjacency matrices with self loops.
    a = (jax.random.uniform(k_a, (N, N)) > 0.6).astype(jnp.float32)
    a = jnp.maximum(a, a.T) + jnp.eye(N, dtype=jnp.float32)
    a2 = (jax.random.uniform(k_a2, (N, N)) > 0.6).astype(jnp.float32)
    a2 = jnp.maximum(a2, a2.T) + jnp.eye(N, dtype=jnp.float32)

    attn_params, dense_params, out_w, out_b = build_params(
        k_p, n_feat, n_attns, dim_attn, n_dense, dim_dense, n_out)

    # Pack all learned parameters once (outside the jitted forward path).
    param_slab, layout = pack_gagan_params(attn_params, dense_params,
                                           out_w, out_b)

    out = gagan_forward(x, a, a2, param_slab, layout=layout,
                        n_attns=n_attns, n_dense=n_dense, n_out=n_out)
    out = jax.block_until_ready(out)
    assert out.shape == (1, n_out)
    assert bool(jnp.isfinite(out).all())

    # Correctness vs. pure-JAX reference.  Attention softmaxes are exact now;
    # only the final class softmax uses the approx (EUP) reciprocal.
    ref = reference_forward(x, a, a2, attn_params, dense_params, out_w, out_b)
    assert bool(jnp.allclose(out, ref, atol=3e-3, rtol=3e-3)), (out, ref)

    print("KERNEL_OK")
</pallas_src>

<mosaic_0001>
module attributes {stable_mosaic.version = 11 : i64} {
  func.func @kernel(%arg0: memref<16x8xf32, #tpu.memory_space<vmem>>, %arg1: memref<16x16xf32, #tpu.memory_space<vmem>>, %arg2: memref<16x16xf32, #tpu.memory_space<vmem>>, %arg3: memref<160x128xf32, #tpu.memory_space<vmem>>, %arg4: memref<1x128xf32, #tpu.memory_space<vmem>>) attributes {dimension_semantics = [], scalar_prefetch = 0 : i64, scratch_operands = 0 : i64, tpu.core_type = #tpu.core_type<tc>} {
    %c0 = arith.constant 0 : index
    %c0_0 = arith.constant 0 : index
    %0 = vector.load %arg0[%c0, %c0_0] : memref<16x8xf32, #tpu.memory_space<vmem>>, vector<16x8xf32>
    %c0_1 = arith.constant 0 : index
    %c0_2 = arith.constant 0 : index
    %1 = vector.load %arg1[%c0_1, %c0_2] : memref<16x16xf32, #tpu.memory_space<vmem>>, vector<16x16xf32>
    %c0_3 = arith.constant 0 : index
    %c0_4 = arith.constant 0 : index
    %2 = vector.load %arg2[%c0_3, %c0_4] : memref<16x16xf32, #tpu.memory_space<vmem>>, vector<16x16xf32>
    %3 = tpu.concatenate %1, %2 in 1 : vector<16x16xf32>, vector<16x16xf32> -> vector<16x32xf32>
    %cst = arith.constant 0.000000e+00 : f32
    %4 = vector.broadcast %cst : f32 to vector<16x32xf32>
    %5 = arith.cmpf ogt, %3, %4 : vector<16x32xf32>
    %cst_5 = arith.constant 0.000000e+00 : f32
    %cst_6 = arith.constant -9.000000e+15 : f32
    %6 = vector.broadcast %cst_5 : f32 to vector<16x32xf32>
    %7 = vector.broadcast %cst_6 : f32 to vector<16x32xf32>
    %8 = arith.select %5, %6, %7 : vector<16x32xi1>, vector<16x32xf32>
    %9 = tpu.concatenate %0, %0 in 0 : vector<16x8xf32>, vector<16x8xf32> -> vector<32x8xf32>
    %c0_7 = arith.constant 0 : index
    %c0_8 = arith.constant 0 : index
    %10 = vector.load %arg3[%c0_7, %c0_8] : memref<160x128xf32, #tpu.memory_space<vmem>>, vector<8x16xf32>
    %c8 = arith.constant 8 : index
    %c0_9 = arith.constant 0 : index
    %11 = vector.load %arg3[%c8, %c0_9] : memref<160x128xf32, #tpu.memory_space<vmem>>, vector<1x16xf32>
    %c16 = arith.constant 16 : index
    %c0_10 = arith.constant 0 : index
    %12 = vector.load %arg3[%c16, %c0_10] : memref<160x128xf32, #tpu.memory_space<vmem>>, vector<1x16xf32>
    %cst_11 = arith.constant dense<0.000000e+00> : vector<32x16xf32>
    %13 = tpu.matmul %9, %10, %cst_11 {dimension_numbers = #tpu.dot_dimension_numbers<[1], [0], [0], [1], [0, 0, 1, 1], [], []>} : vector<32x8xf32>, vector<8x16xf32>, vector<32x16xf32> -> vector<32x16xf32>
    %14 = vector.broadcast %11 : vector<1x16xf32> to vector<32x16xf32>
    %15 = arith.mulf %13, %14 : vector<32x16xf32>
    %cst_12 = arith.constant dense<0.000000e+00> : vector<32xf32>
    %16 = vector.multi_reduction <add>, %15, %cst_12 [1] : vector<32x16xf32> to vector<32xf32>
    %17 = vector.shape_cast %16 : vector<32xf32> to vector<32x1xf32>
    "tpu.trace_start"() <{level = 10 : i32, message = "ch,nh->cn"}> : () -> ()
    %cst_13 = arith.constant dense<0.000000e+00> : vector<1x32xf32>
    %18 = tpu.matmul %12, %13, %cst_13 {dimension_numbers = #tpu.dot_dimension_numbers<[1], [1], [0], [0], [0, 0, 1, 0], [], []>} : vector<1x16xf32>, vector<32x16xf32>, vector<1x32xf32> -> vector<1x32xf32>
    "tpu.trace_stop"() : () -> ()
    %19 = vector.extract_strided_slice %17 {offsets = [0, 0], sizes = [16, 1], strides = [1, 1]} : vector<32x1xf32> to vector<16x1xf32>
    %20 = vector.extract_strided_slice %18 {offsets = [0, 0], sizes = [1, 16], strides = [1, 1]} : vector<1x32xf32> to vector<1x16xf32>
    %21 = vector.broadcast %19 : vector<16x1xf32> to vector<16x16xf32>
    %22 = vector.broadcast %20 : vector<1x16xf32> to vector<16x16xf32>
    %23 = arith.addf %21, %22 : vector<16x16xf32>
    %24 = vector.extract_strided_slice %17 {offsets = [16, 0], sizes = [16, 1], strides = [1, 1]} : vector<32x1xf32> to vector<16x1xf32>
    %25 = vector.extract_strided_slice %18 {offsets = [0, 16], sizes = [1, 16], strides = [1, 1]} : vector<1x32xf32> to vector<1x16xf32>
    %26 = vector.broadcast %24 : vector<16x1xf32> to vector<16x16xf32>
    %27 = vector.broadcast %25 : vector<1x16xf32> to vector<16x16xf32>
    %28 = arith.addf %26, %27 : vector<16x16xf32>
    %29 = tpu.concatenate %23, %28 in 1 : vector<16x16xf32>, vector<16x16xf32> -> vector<16x32xf32>
    %cst_14 = arith.constant 2.000000e-01 : f32
    %30 = vector.broadcast %cst_14 : f32 to vector<16x32xf32>
    %31 = arith.mulf %30, %29 : vector<16x32xf32>
    %32 = arith.maximumf %29, %31 : vector<16x32xf32>
    %33 = arith.addf %32, %8 : vector<16x32xf32>
    %34 = vector.extract_strided_slice %33 {offsets = [0, 0], sizes = [16, 16], strides = [1, 1]} : vector<16x32xf32> to vector<16x16xf32>
    %cst_15 = arith.constant dense<0xFF800000> : vector<16xf32>
    %35 = vector.multi_reduction <maximumf>, %34, %cst_15 [1] : vector<16x16xf32> to vector<16xf32>
    %36 = vector.shape_cast %35 : vector<16xf32> to vector<16x1xf32>
    %37 = vector.extract_strided_slice %33 {offsets = [0, 16], sizes = [16, 16], strides = [1, 1]} : vector<16x32xf32> to vector<16x16xf32>
    %cst_16 = arith.constant dense<0xFF800000> : vector<16xf32>
    %38 = vector.multi_reduction <maximumf>, %37, %cst_16 [1] : vector<16x16xf32> to vector<16xf32>
    %39 = vector.shape_cast %38 : vector<16xf32> to vector<16x1xf32>
    %40 = vector.extract_strided_slice %33 {offsets = [0, 0], sizes = [16, 16], strides = [1, 1]} : vector<16x32xf32> to vector<16x16xf32>
    %41 = vector.broadcast %36 : vector<16x1xf32> to vector<16x16xf32>
    %42 = arith.subf %40, %41 : vector<16x16xf32>
    %43 = vector.extract_strided_slice %33 {offsets = [0, 16], sizes = [16, 16], strides = [1, 1]} : vector<16x32xf32> to vector<16x16xf32>
    %44 = vector.broadcast %39 : vector<16x1xf32> to vector<16x16xf32>
    %45 = arith.subf %43, %44 : vector<16x16xf32>
    %46 = tpu.concatenate %42, %45 in 1 : vector<16x16xf32>, vector<16x16xf32> -> vector<16x32xf32>
    %47 = math.exp %46 : vector<16x32xf32>
    %48 = vector.extract_strided_slice %47 {offsets = [0, 0], sizes = [16, 16], strides = [1, 1]} : vector<16x32xf32> to vector<16x16xf32>
    %cst_17 = arith.constant dense<0.000000e+00> : vector<16xf32>
    %49 = vector.multi_reduction <add>, %48, %cst_17 [1] : vector<16x16xf32> to vector<16xf32>
    %50 = vector.shape_cast %49 : vector<16xf32> to vector<16x1xf32>
    %51 = vector.extract_strided_slice %47 {offsets = [0, 16], sizes = [16, 16], strides = [1, 1]} : vector<16x32xf32> to vector<16x16xf32>
    %cst_18 = arith.constant dense<0.000000e+00> : vector<16xf32>
    %52 = vector.multi_reduction <add>, %51, %cst_18 [1] : vector<16x16xf32> to vector<16xf32>
    %53 = vector.shape_cast %52 : vector<16xf32> to vector<16x1xf32>
    %54 = vector.extract_strided_slice %47 {offsets = [0, 0], sizes = [16, 16], strides = [1, 1]} : vector<16x32xf32> to vector<16x16xf32>
    %55 = vector.broadcast %50 : vector<16x1xf32> to vector<16x16xf32>
    %56 = arith.divf %54, %55 : vector<16x16xf32>
    %57 = vector.extract_strided_slice %13 {offsets = [0, 0], sizes = [16, 16], strides = [1, 1]} : vector<32x16xf32> to vector<16x16xf32>
    %cst_19 = arith.constant dense<0.000000e+00> : vector<16x16xf32>
    %58 = tpu.matmul %56, %57, %cst_19 {dimension_numbers = #tpu.dot_dimension_numbers<[1], [0], [0], [1], [0, 0, 1, 1], [], []>} : vector<16x16xf32>, vector<16x16xf32>, vector<16x16xf32> -> vector<16x16xf32>
    %59 = vector.extract_strided_slice %47 {offsets = [0, 16], sizes = [16, 16], strides = [1, 1]} : vector<16x32xf32> to vector<16x16xf32>
    %60 = vector.broadcast %53 : vector<16x1xf32> to vector<16x16xf32>
    %61 = arith.divf %59, %60 : vector<16x16xf32>
    %62 = vector.extract_strided_slice %13 {offsets = [16, 0], sizes = [16, 16], strides = [1, 1]} : vector<32x16xf32> to vector<16x16xf32>
    %cst_20 = arith.constant dense<0.000000e+00> : vector<16x16xf32>
    %63 = tpu.matmul %61, %62, %cst_20 {dimension_numbers = #tpu.dot_dimension_numbers<[1], [0], [0], [1], [0, 0, 1, 1], [], []>} : vector<16x16xf32>, vector<16x16xf32>, vector<16x16xf32> -> vector<16x16xf32>
    %64 = tpu.concatenate %58, %63 in 0 : vector<16x16xf32>, vector<16x16xf32> -> vector<32x16xf32>
    %cst_21 = arith.constant 0.000000e+00 : f32
    %65 = vector.broadcast %cst_21 : f32 to vector<32x16xf32>
    %66 = arith.cmpf ogt, %64, %65 : vector<32x16xf32>
    %cst_22 = arith.constant 0.000000e+00 : f32
    %67 = vector.broadcast %cst_22 : f32 to vector<32x16xf32>
    %68 = arith.minimumf %64, %67 : vector<32x16xf32>
    %69 = math.exp %68 : vector<32x16xf32>
    %cst_23 = arith.constant 1.000000e+00 : f32
    %70 = vector.broadcast %cst_23 : f32 to vector<32x16xf32>
    %71 = arith.subf %69, %70 : vector<32x16xf32>
    %72 = arith.select %66, %64, %71 : vector<32x16xi1>, vector<32x16xf32>
    %c24 = arith.constant 24 : index
    %c0_24 = arith.constant 0 : index
    %73 = vector.load %arg3[%c24, %c0_24] : memref<160x128xf32, #tpu.memory_space<vmem>>, vector<16x16xf32>
    %c40 = arith.constant 40 : index
    %c0_25 = arith.constant 0 : index
    %74 = vector.load %arg3[%c40, %c0_25] : memref<160x128xf32, #tpu.memory_space<vmem>>, vector<1x16xf32>
    %c48 = arith.constant 48 : index
    %c0_26 = arith.constant 0 : index
    %75 = vector.load %arg3[%c48, %c0_26] : memref<160x128xf32, #tpu.memory_space<vmem>>, vector<1x16xf32>
    %cst_27 = arith.constant dense<0.000000e+00> : vector<32x16xf32>
    %76 = tpu.matmul %72, %73, %cst_27 {dimension_numbers = #tpu.dot_dimension_numbers<[1], [0], [0], [1], [0, 0, 1, 1], [], []>} : vector<32x16xf32>, vector<16x16xf32>, vector<32x16xf32> -> vector<32x16xf32>
    %77 = vector.broadcast %74 : vector<1x16xf32> to vector<32x16xf32>
    %78 = arith.mulf %76, %77 : vector<32x16xf32>
    %cst_28 = arith.constant dense<0.000000e+00> : vector<32xf32>
    %79 = vector.multi_reduction <add>, %78, %cst_28 [1] : vector<32x16xf32> to vector<32xf32>
    %80 = vector.shape_cast %79 : vector<32xf32> to vector<32x1xf32>
    "tpu.trace_start"() <{level = 10 : i32, message = "ch,nh->cn"}> : () -> ()
    %cst_29 = arith.constant dense<0.000000e+00> : vector<1x32xf32>
    %81 = tpu.matmul %75, %76, %cst_29 {dimension_numbers = #tpu.dot_dimension_numbers<[1], [1], [0], [0], [0, 0, 1, 0], [], []>} : vector<1x16xf32>, vector<32x16xf32>, vector<1x32xf32> -> vector<1x32xf32>
    "tpu.trace_stop"() : () -> ()
    %82 = vector.extract_strided_slice %80 {offsets = [0, 0], sizes = [16, 1], strides = [1, 1]} : vector<32x1xf32> to vector<16x1xf32>
    %83 = vector.extract_strided_slice %81 {offsets = [0, 0], sizes = [1, 16], strides = [1, 1]} : vector<1x32xf32> to vector<1x16xf32>
    %84 = vector.broadcast %82 : vector<16x1xf32> to vector<16x16xf32>
    %85 = vector.broadcast %83 : vector<1x16xf32> to vector<16x16xf32>
    %86 = arith.addf %84, %85 : vector<16x16xf32>
    %87 = vector.extract_strided_slice %80 {offsets = [16, 0], sizes = [16, 1], strides = [1, 1]} : vector<32x1xf32> to vector<16x1xf32>
    %88 = vector.extract_strided_slice %81 {offsets = [0, 16], sizes = [1, 16], strides = [1, 1]} : vector<1x32xf32> to vector<1x16xf32>
    %89 = vector.broadcast %87 : vector<16x1xf32> to vector<16x16xf32>
    %90 = vector.broadcast %88 : vector<1x16xf32> to vector<16x16xf32>
    %91 = arith.addf %89, %90 : vector<16x16xf32>
    %92 = tpu.concatenate %86, %91 in 1 : vector<16x16xf32>, vector<16x16xf32> -> vector<16x32xf32>
    %cst_30 = arith.constant 2.000000e-01 : f32
    %93 = vector.broadcast %cst_30 : f32 to vector<16x32xf32>
    %94 = arith.mulf %93, %92 : vector<16x32xf32>
    %95 = arith.maximumf %92, %94 : vector<16x32xf32>
    %96 = arith.addf %95, %8 : vector<16x32xf32>
    %97 = vector.extract_strided_slice %96 {offsets = [0, 0], sizes = [16, 16], strides = [1, 1]} : vector<16x32xf32> to vector<16x16xf32>
    %cst_31 = arith.constant dense<0xFF800000> : vector<16xf32>
    %98 = vector.multi_reduction <maximumf>, %97, %cst_31 [1] : vector<16x16xf32> to vector<16xf32>
    %99 = vector.shape_cast %98 : vector<16xf32> to vector<16x1xf32>
    %100 = vector.extract_strided_slice %96 {offsets = [0, 16], sizes = [16, 16], strides = [1, 1]} : vector<16x32xf32> to vector<16x16xf32>
    %cst_32 = arith.constant dense<0xFF800000> : vector<16xf32>
    %101 = vector.multi_reduction <maximumf>, %100, %cst_32 [1] : vector<16x16xf32> to vector<16xf32>
    %102 = vector.shape_cast %101 : vector<16xf32> to vector<16x1xf32>
    %103 = vector.extract_strided_slice %96 {offsets = [0, 0], sizes = [16, 16], strides = [1, 1]} : vector<16x32xf32> to vector<16x16xf32>
    %104 = vector.broadcast %99 : vector<16x1xf32> to vector<16x16xf32>
    %105 = arith.subf %103, %104 : vector<16x16xf32>
    %106 = vector.extract_strided_slice %96 {offsets = [0, 16], sizes = [16, 16], strides = [1, 1]} : vector<16x32xf32> to vector<16x16xf32>
    %107 = vector.broadcast %102 : vector<16x1xf32> to vector<16x16xf32>
    %108 = arith.subf %106, %107 : vector<16x16xf32>
    %109 = tpu.concatenate %105, %108 in 1 : vector<16x16xf32>, vector<16x16xf32> -> vector<16x32xf32>
    %110 = math.exp %109 : vector<16x32xf32>
    %111 = vector.extract_strided_slice %110 {offsets = [0, 0], sizes = [16, 16], strides = [1, 1]} : vector<16x32xf32> to vector<16x16xf32>
    %cst_33 = arith.constant dense<0.000000e+00> : vector<16xf32>
    %112 = vector.multi_reduction <add>, %111, %cst_33 [1] : vector<16x16xf32> to vector<16xf32>
    %113 = vector.shape_cast %112 : vector<16xf32> to vector<16x1xf32>
    %114 = vector.extract_strided_slice %110 {offsets = [0, 16], sizes = [16, 16], strides = [1, 1]} : vector<16x32xf32> to vector<16x16xf32>
    %cst_34 = arith.constant dense<0.000000e+00> : vector<16xf32>
    %115 = vector.multi_reduction <add>, %114, %cst_34 [1] : vector<16x16xf32> to vector<16xf32>
    %116 = vector.shape_cast %115 : vector<16xf32> to vector<16x1xf32>
    %117 = vector.extract_strided_slice %110 {offsets = [0, 0], sizes = [16, 16], strides = [1, 1]} : vector<16x32xf32> to vector<16x16xf32>
    %118 = vector.broadcast %113 : vector<16x1xf32> to vector<16x16xf32>
    %119 = arith.divf %117, %118 : vector<16x16xf32>
    %120 = vector.extract_strided_slice %76 {offsets = [0, 0], sizes = [16, 16], strides = [1, 1]} : vector<32x16xf32> to vector<16x16xf32>
    %cst_35 = arith.constant dense<0.000000e+00> : vector<16x16xf32>
    %121 = tpu.matmul %119, %120, %cst_35 {dimension_numbers = #tpu.dot_dimension_numbers<[1], [0], [0], [1], [0, 0, 1, 1], [], []>} : vector<16x16xf32>, vector<16x16xf32>, vector<16x16xf32> -> vector<16x16xf32>
    %122 = vector.extract_strided_slice %110 {offsets = [0, 16], sizes = [16, 16], strides = [1, 1]} : vector<16x32xf32> to vector<16x16xf32>
    %123 = vector.broadcast %116 : vector<16x1xf32> to vector<16x16xf32>
    %124 = arith.divf %122, %123 : vector<16x16xf32>
    %125 = vector.extract_strided_slice %76 {offsets = [16, 0], sizes = [16, 16], strides = [1, 1]} : vector<32x16xf32> to vector<16x16xf32>
    %cst_36 = arith.constant dense<0.000000e+00> : vector<16x16xf32>
    %126 = tpu.matmul %124, %125, %cst_36 {dimension_numbers = #tpu.dot_dimension_numbers<[1], [0], [0], [1], [0, 0, 1, 1], [], []>} : vector<16x16xf32>, vector<16x16xf32>, vector<16x16xf32> -> vector<16x16xf32>
    %127 = tpu.concatenate %121, %126 in 0 : vector<16x16xf32>, vector<16x16xf32> -> vector<32x16xf32>
    %cst_37 = arith.constant 0.000000e+00 : f32
    %128 = vector.broadcast %cst_37 : f32 to vector<32x16xf32>
    %129 = arith.cmpf ogt, %127, %128 : vector<32x16xf32>
    %cst_38 = arith.constant 0.000000e+00 : f32
    %130 = vector.broadcast %cst_38 : f32 to vector<32x16xf32>
    %131 = arith.minimumf %127, %130 : vector<32x16xf32>
    %132 = math.exp %131 : vector<32x16xf32>
    %cst_39 = arith.constant 1.000000e+00 : f32
    %133 = vector.broadcast %cst_39 : f32 to vector<32x16xf32>
    %134 = arith.subf %132, %133 : vector<32x16xf32>
    %135 = arith.select %129, %127, %134 : vector<32x16xi1>, vector<32x16xf32>
    %136 = vector.extract_strided_slice %135 {offsets = [16, 0], sizes = [16, 16], strides = [1, 1]} : vector<32x16xf32> to vector<16x16xf32>
    %137 = vector.extract_strided_slice %135 {offsets = [0, 0], sizes = [16, 16], strides = [1, 1]} : vector<32x16xf32> to vector<16x16xf32>
    %138 = arith.subf %136, %137 : vector<16x16xf32>
    %cst_40 = arith.constant dense<0.000000e+00> : vector<16xf32>
    %139 = vector.multi_reduction <add>, %138, %cst_40 [0] : vector<16x16xf32> to vector<16xf32>
    %140 = vector.shape_cast %139 : vector<16xf32> to vector<1x16xf32>
    %cst_41 = arith.constant 1.600000e+01 : f32
    %141 = vector.broadcast %cst_41 : f32 to vector<1x16xf32>
    %142 = arith.divf %140, %141 : vector<1x16xf32>
    %c56 = arith.constant 56 : index
    %c0_42 = arith.constant 0 : index
    %143 = vector.load %arg3[%c56, %c0_42] : memref<160x128xf32, #tpu.memory_space<vmem>>, vector<16x32xf32>
    %c72 = arith.constant 72 : index
    %c0_43 = arith.constant 0 : index
    %144 = vector.load %arg3[%c72, %c0_43] : memref<160x128xf32, #tpu.memory_space<vmem>>, vector<1x32xf32>
    %cst_44 = arith.constant dense<0.000000e+00> : vector<1x32xf32>
    %145 = tpu.matmul %142, %143, %cst_44 {dimension_numbers = #tpu.dot_dimension_numbers<[1], [0], [0], [1], [0, 0, 1, 1], [], []>} : vector<1x16xf32>, vector<16x32xf32>, vector<1x32xf32> -> vector<1x32xf32>
    %146 = arith.addf %145, %144 : vector<1x32xf32>
    %cst_45 = arith.constant 0.000000e+00 : f32
    %147 = vector.broadcast %cst_45 : f32 to vector<1x32xf32>
    %148 = arith.maximumf %146, %147 : vector<1x32xf32>
    %c80 = arith.constant 80 : index
    %c0_46 = arith.constant 0 : index
    %149 = vector.load %arg3[%c80, %c0_46] : memref<160x128xf32, #tpu.memory_space<vmem>>, vector<32x32xf32>
    %c112 = arith.constant 112 : index
    %c0_47 = arith.constant 0 : index
    %150 = vector.load %arg3[%c112, %c0_47] : memref<160x128xf32, #tpu.memory_space<vmem>>, vector<1x32xf32>
    %cst_48 = arith.constant dense<0.000000e+00> : vector<1x32xf32>
    %151 = tpu.matmul %148, %149, %cst_48 {dimension_numbers = #tpu.dot_dimension_numbers<[1], [0], [0], [1], [0, 0, 1, 1], [], []>} : vector<1x32xf32>, vector<32x32xf32>, vector<1x32xf32> -> vector<1x32xf32>
    %152 = arith.addf %151, %150 : vector<1x32xf32>
    %cst_49 = arith.constant 0.000000e+00 : f32
    %153 = vector.broadcast %cst_49 : f32 to vector<1x32xf32>
    %154 = arith.maximumf %152, %153 : vector<1x32xf32>
    %c120 = arith.constant 120 : index
    %c0_50 = arith.constant 0 : index
    %155 = vector.load %arg3[%c120, %c0_50] : memref<160x128xf32, #tpu.memory_space<vmem>>, vector<32x128xf32>
    %c152 = arith.constant 152 : index
    %c0_51 = arith.constant 0 : index
    %156 = vector.load %arg3[%c152, %c0_51] : memref<160x128xf32, #tpu.memory_space<vmem>>, vector<1x128xf32>
    %cst_52 = arith.constant dense<0.000000e+00> : vector<1x128xf32>
    %157 = tpu.matmul %154, %155, %cst_52 {dimension_numbers = #tpu.dot_dimension_numbers<[1], [0], [0], [1], [0, 0, 1, 1], [], []>} : vector<1x32xf32>, vector<32x128xf32>, vector<1x128xf32> -> vector<1x128xf32>
    %158 = arith.addf %157, %156 : vector<1x128xf32>
    %cst_53 = arith.constant dense<0xFF800000> : vector<1xf32>
    %159 = vector.multi_reduction <maximumf>, %158, %cst_53 [1] : vector<1x128xf32> to vector<1xf32>
    %160 = vector.shape_cast %159 : vector<1xf32> to vector<1x1xf32>
    %161 = vector.broadcast %160 : vector<1x1xf32> to vector<1x128xf32>
    %162 = arith.subf %158, %161 : vector<1x128xf32>
    %163 = math.exp %162 : vector<1x128xf32>
    %cst_54 = arith.constant dense<0.000000e+00> : vector<1xf32>
    %164 = vector.multi_reduction <add>, %163, %cst_54 [1] : vector<1x128xf32> to vector<1xf32>
    %165 = vector.shape_cast %164 : vector<1xf32> to vector<1x1xf32>
    %166 = tpu.reciprocal %165 {approx = true} : vector<1x1xf32> -> vector<1x1xf32>
    %167 = vector.broadcast %166 : vector<1x1xf32> to vector<1x128xf32>
    %168 = arith.mulf %163, %167 : vector<1x128xf32>
    %c0_55 = arith.constant 0 : index
    %c0_56 = arith.constant 0 : index
    %169 = vector.load %arg4[%c0_55, %c0_56] : memref<1x128xf32, #tpu.memory_space<vmem>>, vector<1x128xf32>
    tpu.vector_store %arg4[%c0_55, %c0_56], %168 {strides = array<i32>} : memref<1x128xf32, #tpu.memory_space<vmem>>, vector<1x128xf32>,
    return
  }
}

</mosaic_0001>

<llo_original>
// kernel: gagan_forward.1
$region0: #{gagan_forward.1}
  #allocation0 [shape = 'u32[]', space=smem, size = 0x4, offset = 0x4, fixed_abs, tag = 'smem constant byte address 0x4 - core index']
  #allocation1 [shape = 'u32[144,128]{1,0:T(1,128)}', space=vmem, size = 0x12000, scoped, tag = 'internal scratch']
  %s0 = inlined_call_operand.vmem [shape: f32[16,8], index: 0, kind: input, shape index: {}]
  %s1 = inlined_call_operand.vmem [shape: f32[16,16], index: 1, kind: input, shape index: {}]
  %s2 = inlined_call_operand.hbm [shape: f32[16,16], index: 2, kind: input, shape index: {}]
  %s3 = inlined_call_operand.hbm [shape: f32[160,128], index: 3, kind: input, shape index: {}]
  %s4 = inlined_call_operand.hbm [shape: f32[1,128], index: 4, kind: output, shape index: {}]
  %s5 = sld [smem:[#allocation0]]
  $region34: #{gagan_forward.1} parent=0
    _
  %s7 = ssub.s32 1, %s5
  %s8 = scalar_select 0, %s7, %s5
  $region1: #{gagan_forward.1} parent=0
    #allocation2 [shape = 'u8[8192]{0}', space=vmem, size = 0x2000, scoped, tag = 'input window, operand 2, single buffered']
    #allocation3 [shape = 's32[1]{0}', space=sflag, size = 0x4, scoped, tag = 'scoped memory for gagan_forward.1']
    #allocation4 [shape = 's32[1]{0}', space=sflag, size = 0x4, scoped, tag = 'scoped memory for gagan_forward.1']
    #allocation5 [shape = 'u8[81920]{0}', space=vmem, size = 0x14000, scoped, tag = 'input window, operand 3, single buffered']
    #allocation6 [shape = 's32[1]{0}', space=sflag, size = 0x4, scoped, tag = 'scoped memory for gagan_forward.1']
    #allocation7 [shape = 'u8[512]{0}', space=vmem, size = 0x400, scoped, tag = 'output window, operand 0, single buffered']
    %9 = vsyncpa [#allocation3], 0
    %10 = vsyncpa [#allocation6], 0
    %11 = vsyncpa [#allocation4], 0
    // Predicated region
    $region2: #{gagan_forward.1} parent=1 // pred_check
      _
    $region3: #{gagan_forward.1} parent=1 // pred_check_branch
      %13 = sbr.rel (0) target = $region5
    $region4: #{gagan_forward.1} parent=1 // pred_region
      _
    $region5: #{gagan_forward.1} parent=1 // pred_fallthru
      _
    // Predicated region
    $region6: #{gagan_forward.1} parent=1 // pred_check
      _
    $region7: #{gagan_forward.1} parent=1 // pred_check_branch
      %15 = sbr.rel (0) target = $region9
    $region8: #{gagan_forward.1} parent=1 // pred_region
      _
    $region9: #{gagan_forward.1} parent=1 // pred_fallthru
      _
    // Predicated region
    $region10: #{gagan_forward.1} parent=1 // pred_check
      _
    $region11: #{gagan_forward.1} parent=1 // pred_check_branch
      %17 = sbr.rel (0) target = $region13
    $region12: #{gagan_forward.1} parent=1 // pred_region
      %s19 = ssub.s32 256, 256
      %20 = vsyncadd [#allocation3], %s19
      %s21 = sshll.u32 [#allocation2], 4
      %s22 = int_to_ptr.vmem [resolvable:$true] %s21
      %27 = dma.hbm_to_vmem [thread:$0]  %s2, 256, %s22, [#allocation3], 128, 128, 8
    $region13: #{gagan_forward.1} parent=1 // pred_fallthru
      _
    // Predicated region
    $region14: #{gagan_forward.1} parent=1 // pred_check
      _
    $region15: #{gagan_forward.1} parent=1 // pred_check_branch
      %29 = sbr.rel (0) target = $region17
    $region16: #{gagan_forward.1} parent=1 // pred_region
      %s31 = ssub.s32 2560, 2560
      %32 = vsyncadd [#allocation6], %s31
      %s33 = sshll.u32 [#allocation5], 4
      %s34 = int_to_ptr.vmem [resolvable:$true] %s33
      %39 = dma.hbm_to_vmem [thread:$0]  %s3, 2560, %s34, [#allocation6], 128, 128, 8
    $region17: #{gagan_forward.1} parent=1 // pred_fallthru
      _
    // Predicated region
    $region18: #{gagan_forward.1} parent=1 // pred_check
      _
    $region19: #{gagan_forward.1} parent=1 // pred_check_branch
      %41 = sbr.rel (0) target = $region21
    $region20: #{gagan_forward.1} parent=1 // pred_region
      %42 = dma.done [#allocation3], 256
    $region21: #{gagan_forward.1} parent=1 // pred_fallthru
      _
    // Predicated region
    $region22: #{gagan_forward.1} parent=1 // pred_check
      _
    $region23: #{gagan_forward.1} parent=1 // pred_check_branch
      %44 = sbr.rel (0) target = $region25
    $region24: #{gagan_forward.1} parent=1 // pred_region
      %45 = dma.done [#allocation6], 2560
    $region25: #{gagan_forward.1} parent=1 // pred_fallthru
      _
    %v46 = vld [vmem:[%s0] sm:$0xff]
    %v47 = vld [vmem:[%s0 + $0x8] sm:$0xff]
    %v48 = vld [vmem:[%s1] sm:$0xff]
    %v49 = vld [vmem:[%s1 + $0x8] sm:$0xff]
    %v50 = vld [vmem:[#allocation2] sm:$0xff]
    %v51 = vld [vmem:[#allocation2 + $0x8] sm:$0xff]
    %54 = vrot.lane.b32.xlu0 %v50, 16
    %v55 = vpop.permute.xlu0 %54
    %56 = vrot.lane.b32.xlu0 %v51, 16
    %v57 = vpop.permute.xlu0 %56
    %vm60 = vcmask 130048
    %v61 = vsel %vm60, %v48, %v55
    %v62 = vsel %vm60, %v49, %v57
    %vm63 = vcmp.gt.f32.partialorder %v61, 0.0
    %vm64 = vcmp.gt.f32.partialorder %v62, 0.0
    %v65 = vsel %vm63, 0.0, -9e+15
    %v66 = vsel %vm64, 0.0, -9e+15
    %v67 = vld [vmem:[#allocation5] sm:$0xff]
    %v68 = vld [vmem:[#allocation5 + $0x8] sm:$0x1]
    %v69 = vld [vmem:[#allocation5 + $0x10] sm:$0x1]
    %vm70 = vcmask 64512
    %v72 = vsel %vm70, %v46, 0
    %v75 = vsel %vm70, %v47, 0
    %77 = vmatprep.subr.mxu0 0.0
    %78 = vmatpush1.msra.mxu0 %v67
    %79 = vmatprep.subr.mxu0 0.0
    %80 = vmatpush1.msra.mxu0 0.0
    %81 = vmatprep.subr.mxu0 0.0
    %82 = vmatpush1.msra.mxu0 0.0
    %83 = vmatprep.subr.mxu0 0.0
    %84 = vmatpush1.msra.mxu0 0.0
    %85 = vmatprep.subr.mxu0 0.0
    %86 = vmatpush1.msra.mxu0 0.0
    %87 = vmatprep.subr.mxu0 0.0
    %88 = vmatpush1.msra.mxu0 0.0
    %89 = vmatprep.subr.mxu0 0.0
    %90 = vmatpush1.msra.mxu0 0.0
    %91 = vmatprep.subr.mxu0 0.0
    %92 = vmatpush1.msra.mxu0 0.0
    %93 = vmatprep.subr.mxu0 0.0
    %94 = vmatpush1.msra.mxu0 0.0
    %95 = vmatprep.subr.mxu0 0.0
    %96 = vmatpush1.msra.mxu0 0.0
    %97 = vmatprep.subr.mxu0 0.0
    %98 = vmatpush1.msra.mxu0 0.0
    %99 = vmatprep.subr.mxu0 0.0
    %100 = vmatpush1.msra.mxu0 0.0
    %101 = vmatprep.subr.mxu0 0.0
    %102 = vmatpush1.msra.mxu0 0.0
    %103 = vmatprep.subr.mxu0 0.0
    %104 = vmatpush1.msra.mxu0 0.0
    %105 = vmatprep.subr.mxu0 0.0
    %106 = vmatpush1.msra.mxu0 0.0
    %107 = vmatprep.subr.mxu0 0.0
    %108 = vmatpush1.msra.mxu0 0.0
    %109 = vmatprep.subr.mxu0 0.0
    %110 = vmatpush1.msra.mxu0 0.0
    %111 = vmatprep.subr.mxu0 0.0
    %112 = vmatpush1.msra.mxu0 0.0
    %113 = vmatprep.subr.mxu0 0.0
    %114 = vmatpush1.msra.mxu0 0.0
    %115 = vmatprep.subr.mxu0 0.0
    %116 = vmatpush1.msra.mxu0 0.0
    %117 = vmatprep.subr.mxu0 0.0
    %118 = vmatpush1.msra.mxu0 0.0
    %119 = vmatprep.subr.mxu0 0.0
    %120 = vmatpush1.msra.mxu0 0.0
    %121 = vmatprep.subr.mxu0 0.0
    %122 = vmatpush1.msra.mxu0 0.0
    %123 = vmatprep.subr.mxu0 0.0
    %124 = vmatpush1.msra.mxu0 0.0
    %125 = vmatprep.subr.mxu0 0.0
    %126 = vmatpush1.msra.mxu0 0.0
    %127 = vmatprep.subr.mxu0 0.0
    %128 = vmatpush1.msra.mxu0 0.0
    %129 = vmatprep.subr.mxu0 0.0
    %130 = vmatpush1.msra.mxu0 0.0
    %131 = vmatprep.subr.mxu0 0.0
    %132 = vmatpush1.msra.mxu0 0.0
    %133 = vmatprep.subr.mxu0 0.0
    %134 = vmatpush1.msra.mxu0 0.0
    %135 = vmatprep.subr.mxu0 0.0
    %136 = vmatpush1.msra.mxu0 0.0
    %137 = vmatprep.subr.mxu0 0.0
    %138 = vmatpush1.msra.mxu0 0.0
    %139 = vmatprep.subr.mxu0 0.0
    %140 = vmatpush1.msra.mxu0 0.0
    %141 = vmatprep.mubr.f32.mxu0 0.0
    %142 = vmatmul.mubr.f32.gmra.mrb[0].mxu0 %v72
    %v143 = vpop.f32.mrb[0].mxu0
    %v144 = vadd.f32 0.0, %v143
    %v145 = vpop.f32.mrb[0].mxu0
    %146 = vmatprep.mubr.f32.mxu0 0.0
    %147 = vmatmul.mubr.f32.gmra.mrb[0].mxu0 %v75
    %v148 = vpop.f32.mrb[0].mxu0
    %v149 = vadd.f32 0.0, %v148
    %v150 = vpop.f32.mrb[0].mxu0
    %151 = vmatprep.mubr.f32.mxu0 0.0
    %152 = vmatmul.mubr.f32.gmra.mrb[0].mxu0 %v72
    %v153 = vpop.f32.mrb[0].mxu0
    %v154 = vadd.f32 0.0, %v153
    %v155 = vpop.f32.mrb[0].mxu0
    %156 = vmatprep.mubr.f32.mxu0 0.0
    %157 = vmatmul.mubr.f32.gmra.mrb[0].mxu0 %v75
    %v158 = vpop.f32.mrb[0].mxu0
    %v159 = vadd.f32 0.0, %v158
    %v160 = vpop.f32.mrb[0].mxu0
    %161 = vdwg.mxu0
    %v162 = vlaneseq
    %v163 = vshrl.u32 %v162, 7
    %v164 = vsub.s32 0, %v163
    %v165 = vrot.slane %v68, %v164
    %v166 = vmul.f32 %v144, %v165
    %v167 = vmul.f32 %v149, %v165
    %v168 = vmul.f32 %v154, %v165
    %v169 = vmul.f32 %v159, %v165
    %v170 = vsel %vm60, %v166, 0.0
    %171 = vadd.xlane.f32.xlu0 %v170
    %v172 = vpop.xlane.xlu0 %171
    %v173 = vsel %vm60, %v167, 0.0
    %174 = vadd.xlane.f32.xlu0 %v173
    %v175 = vpop.xlane.xlu0 %174
    %v176 = vsel %vm60, %v168, 0.0
    %177 = vadd.xlane.f32.xlu0 %v176
    %v178 = vpop.xlane.xlu0 %177
    %v179 = vsel %vm60, %v169, 0.0
    %180 = vadd.xlane.f32.xlu0 %v179
    %v181 = vpop.xlane.xlu0 %180
    %v183 = vsel %vm60, %v69, 0
    %v186 = vsel %vm60, %v144, 0
    %v189 = vsel %vm60, %v149, 0
    %v192 = vsel %vm60, %v154, 0
    %v195 = vsel %vm60, %v159, 0
    %197 = vmatprep.subr.mxu0 0.0
    %198 = vmatpush1.xpose.msra.mxu0 %v186
    %199 = vmatprep.subr.mxu0 0.0
    %200 = vmatpush1.xpose.msra.mxu0 %v189
    %201 = vmatprep.subr.mxu0 0.0
    %202 = vmatpush1.xpose.msra.mxu0 %v192
    %203 = vmatprep.subr.mxu0 0.0
    %204 = vmatpush1.xpose.msra.mxu0 %v195
    %205 = vmatprep.subr.mxu0 0.0
    %206 = vmatpush1.xpose.msra.mxu0 0.0
    %207 = vmatprep.subr.mxu0 0.0
    %208 = vmatpush1.xpose.msra.mxu0 0.0
    %209 = vmatprep.subr.mxu0 0.0
    %210 = vmatpush1.xpose.msra.mxu0 0.0
    %211 = vmatprep.subr.mxu0 0.0
    %212 = vmatpush1.xpose.msra.mxu0 0.0
    %213 = vmatprep.subr.mxu0 0.0
    %214 = vmatpush1.xpose.msra.mxu0 0.0
    %215 = vmatprep.subr.mxu0 0.0
    %216 = vmatpush1.xpose.msra.mxu0 0.0
    %217 = vmatprep.subr.mxu0 0.0
    %218 = vmatpush1.xpose.msra.mxu0 0.0
    %219 = vmatprep.subr.mxu0 0.0
    %220 = vmatpush1.xpose.msra.mxu0 0.0
    %221 = vmatprep.subr.mxu0 0.0
    %222 = vmatpush1.xpose.msra.mxu0 0.0
    %223 = vmatprep.subr.mxu0 0.0
    %224 = vmatpush1.xpose.msra.mxu0 0.0
    %225 = vmatprep.subr.mxu0 0.0
    %226 = vmatpush1.xpose.msra.mxu0 0.0
    %227 = vmatprep.subr.mxu0 0.0
    %228 = vmatpush1.xpose.msra.mxu0 0.0
    %229 = vmatprep.subr.mxu0 0.0
    %230 = vmatpush1.xpose.msra.mxu0 0.0
    %231 = vmatprep.subr.mxu0 0.0
    %232 = vmatpush1.xpose.msra.mxu0 0.0
    %233 = vmatprep.subr.mxu0 0.0
    %234 = vmatpush1.xpose.msra.mxu0 0.0
    %235 = vmatprep.subr.mxu0 0.0
    %236 = vmatpush1.xpose.msra.mxu0 0.0
    %237 = vmatprep.subr.mxu0 0.0
    %238 = vmatpush1.xpose.msra.mxu0 0.0
    %239 = vmatprep.subr.mxu0 0.0
    %240 = vmatpush1.xpose.msra.mxu0 0.0
    %241 = vmatprep.subr.mxu0 0.0
    %242 = vmatpush1.xpose.msra.mxu0 0.0
    %243 = vmatprep.subr.mxu0 0.0
    %244 = vmatpush1.xpose.msra.mxu0 0.0
    %245 = vmatprep.subr.mxu0 0.0
    %246 = vmatpush1.xpose.msra.mxu0 0.0
    %247 = vmatprep.subr.mxu0 0.0
    %248 = vmatpush1.xpose.msra.mxu0 0.0
    %249 = vmatprep.subr.mxu0 0.0
    %250 = vmatpush1.xpose.msra.mxu0 0.0
    %251 = vmatprep.subr.mxu0 0.0
    %252 = vmatpush1.xpose.msra.mxu0 0.0
    %253 = vmatprep.subr.mxu0 0.0
    %254 = vmatpush1.xpose.msra.mxu0 0.0
    %255 = vmatprep.subr.mxu0 0.0
    %256 = vmatpush1.xpose.msra.mxu0 0.0
    %257 = vmatprep.subr.mxu0 0.0
    %258 = vmatpush1.xpose.msra.mxu0 0.0
    %259 = vmatprep.subr.mxu0 0.0
    %260 = vmatpush1.xpose.msra.mxu0 0.0
    %261 = vmatprep.mubr.f32.mxu0 0.0
    %262 = vmatmul.mubr.f32.gmra.mrb[0].mxu0 %v183
    %v263 = vpop.f32.mrb[0].mxu0
    %v264 = vadd.f32 0.0, %v263
    %v265 = vpop.f32.mrb[0].mxu0
    %266 = vdwg.mxu0
    %v267 = vlaneseq
    %v268 = vshrl.u32 %v267, 7
    %v269 = vsub.s32 0, %v268
    %v270 = vrot.slane %v264, %v269
    %v271 = vadd.f32 %v172, %v270
    %v272 = vadd.f32 %v175, %v270
    %v273 = vadd.f32 %v178, %v270
    %v274 = vadd.f32 %v181, %v270
    %v275 = vsel %vm60, %v271, %v273
    %v276 = vsel %vm60, %v272, %v274
    %v277 = vmul.f32 %v275, 0.2
    %v278 = vmul.f32 %v276, 0.2
    %v279 = vmax.f32 %v275, %v277
    %v280 = vmax.f32 %v276, %v278
    %v281 = vadd.f32 %v279, %v65
    %v282 = vadd.f32 %v280, %v66
    %v283 = vsel %vm60, %v281, -inf
    %284 = vmax.xlane.f32.xlu0 %v283
    %v285 = vpop.xlane.xlu0 %284
    %v286 = vsel %vm60, %v282, -inf
    %287 = vmax.xlane.f32.xlu0 %v286
    %v288 = vpop.xlane.xlu0 %287
    %vm289 = vcmask 261248
    %v290 = vsel %vm289, %v281, -inf
    %291 = vmax.xlane.f32.xlu0 %v290
    %v292 = vpop.xlane.xlu0 %291
    %v293 = vsel %vm289, %v282, -inf
    %294 = vmax.xlane.f32.xlu0 %v293
    %v295 = vpop.xlane.xlu0 %294
    %v296 = vsub.f32 %v281, %v285
    %v297 = vsub.f32 %v282, %v288
    %v298 = vsub.f32 %v281, %v292
    %v299 = vsub.f32 %v282, %v295
    %v300 = vsel %vm60, %v296, %v298
    %v301 = vsel %vm60, %v297, %v299
    %v302 = vmul.f32 %v300, 1.442695
    %v303 = vpow.pop %v302
    %v304 = vmul.f32 %v301, 1.442695
    %v305 = vpow.pop %v304
    %v306 = vsel %vm60, %v303, 0.0
    %307 = vadd.xlane.f32.xlu0 %v306
    %v308 = vpop.xlane.xlu0 %307
    %v309 = vsel %vm60, %v305, 0.0
    %310 = vadd.xlane.f32.xlu0 %v309
    %v311 = vpop.xlane.xlu0 %310
    %314 = vrot.lane.b32.xlu0 %v303, 112
    %v315 = vpop.permute.xlu0 %314
    %316 = vrot.lane.b32.xlu0 %v305, 112
    %v317 = vpop.permute.xlu0 %316
    %v320 = vsel %vm60, %v315, 0.0
    %321 = vadd.xlane.f32.xlu0 %v320
    %v322 = vpop.xlane.xlu0 %321
    %v323 = vsel %vm60, %v317, 0.0
    %324 = vadd.xlane.f32.xlu0 %v323
    %v325 = vpop.xlane.xlu0 %324
    %v326 = vrcp.pop %v308
    %v327 = vmul.f32 %v303, %v326
    %v328 = vrcp.pop %v311
    %v329 = vmul.f32 %v305, %v328
    %v331 = vsel %vm60, %v327, 0
    %v334 = vsel %vm60, %v329, 0
    %336 = vmatprep.subr.mxu0 0.0
    %337 = vmatpush1.msra.mxu0 %v144
    %338 = vmatprep.subr.mxu0 0.0
    %339 = vmatpush1.msra.mxu0 %v149
    %340 = vmatprep.subr.mxu0 0.0
    %341 = vmatpush1.msra.mxu0 0.0
    %342 = vmatprep.subr.mxu0 0.0
    %343 = vmatpush1.msra.mxu0 0.0
    %344 = vmatprep.subr.mxu0 0.0
    %345 = vmatpush1.msra.mxu0 0.0
    %346 = vmatprep.subr.mxu0 0.0
    %347 = vmatpush1.msra.mxu0 0.0
    %348 = vmatprep.subr.mxu0 0.0
    %349 = vmatpush1.msra.mxu0 0.0
    %350 = vmatprep.subr.mxu0 0.0
    %351 = vmatpush1.msra.mxu0 0.0
    %352 = vmatprep.subr.mxu0 0.0
    %353 = vmatpush1.msra.mxu0 0.0
    %354 = vmatprep.subr.mxu0 0.0
    %355 = vmatpush1.msra.mxu0 0.0
    %356 = vmatprep.subr.mxu0 0.0
    %357 = vmatpush1.msra.mxu0 0.0
    %358 = vmatprep.subr.mxu0 0.0
    %359 = vmatpush1.msra.mxu0 0.0
    %360 = vmatprep.subr.mxu0 0.0
    %361 = vmatpush1.msra.mxu0 0.0
    %362 = vmatprep.subr.mxu0 0.0
    %363 = vmatpush1.msra.mxu0 0.0
    %364 = vmatprep.subr.mxu0 0.0
    %365 = vmatpush1.msra.mxu0 0.0
    %366 = vmatprep.subr.mxu0 0.0
    %367 = vmatpush1.msra.mxu0 0.0
    %368 = vmatprep.subr.mxu0 0.0
    %369 = vmatpush1.msra.mxu0 0.0
    %370 = vmatprep.subr.mxu0 0.0
    %371 = vmatpush1.msra.mxu0 0.0
    %372 = vmatprep.subr.mxu0 0.0
    %373 = vmatpush1.msra.mxu0 0.0
    %374 = vmatprep.subr.mxu0 0.0
    %375 = vmatpush1.msra.mxu0 0.0
    %376 = vmatprep.subr.mxu0 0.0
    %377 = vmatpush1.msra.mxu0 0.0
    %378 = vmatprep.subr.mxu0 0.0
    %379 = vmatpush1.msra.mxu0 0.0
    %380 = vmatprep.subr.mxu0 0.0
    %381 = vmatpush1.msra.mxu0 0.0
    %382 = vmatprep.subr.mxu0 0.0
    %383 = vmatpush1.msra.mxu0 0.0
    %384 = vmatprep.subr.mxu0 0.0
    %385 = vmatpush1.msra.mxu0 0.0
    %386 = vmatprep.subr.mxu0 0.0
    %387 = vmatpush1.msra.mxu0 0.0
    %388 = vmatprep.subr.mxu0 0.0
    %389 = vmatpush1.msra.mxu0 0.0
    %390 = vmatprep.subr.mxu0 0.0
    %391 = vmatpush1.msra.mxu0 0.0
    %392 = vmatprep.subr.mxu0 0.0
    %393 = vmatpush1.msra.mxu0 0.0
    %394 = vmatprep.subr.mxu0 0.0
    %395 = vmatpush1.msra.mxu0 0.0
    %396 = vmatprep.subr.mxu0 0.0
    %397 = vmatpush1.msra.mxu0 0.0
    %398 = vmatprep.subr.mxu0 0.0
    %399 = vmatpush1.msra.mxu0 0.0
    %400 = vmatprep.mubr.f32.mxu0 0.0
    %401 = vmatmul.mubr.f32.gmra.mrb[0].mxu0 %v331
    %v402 = vpop.f32.mrb[0].mxu0
    %v403 = vadd.f32 0.0, %v402
    %v404 = vpop.f32.mrb[0].mxu0
    %405 = vmatprep.mubr.f32.mxu0 0.0
    %406 = vmatmul.mubr.f32.gmra.mrb[0].mxu0 %v334
    %v407 = vpop.f32.mrb[0].mxu0
    %v408 = vadd.f32 0.0, %v407
    %v409 = vpop.f32.mrb[0].mxu0
    %410 = vdwg.mxu0
    %v411 = vrcp.pop %v322
    %v412 = vmul.f32 %v303, %v411
    %v413 = vrcp.pop %v325
    %v414 = vmul.f32 %v305, %v413
    %417 = vrot.lane.b32.xlu0 %v412, 112
    %v418 = vpop.permute.xlu0 %417
    %419 = vrot.lane.b32.xlu0 %v414, 112
    %v420 = vpop.permute.xlu0 %419
    %v421 = vsel %vm60, %v418, 0
    %v423 = vsel %vm60, %v420, 0
    %425 = vmatprep.subr.mxu0 0.0
    %426 = vmatpush1.msra.mxu0 %v154
    %427 = vmatprep.subr.mxu0 0.0
    %428 = vmatpush1.msra.mxu0 %v159
    %429 = vmatprep.subr.mxu0 0.0
    %430 = vmatpush1.msra.mxu0 0.0
    %431 = vmatprep.subr.mxu0 0.0
    %432 = vmatpush1.msra.mxu0 0.0
    %433 = vmatprep.subr.mxu0 0.0
    %434 = vmatpush1.msra.mxu0 0.0
    %435 = vmatprep.subr.mxu0 0.0
    %436 = vmatpush1.msra.mxu0 0.0
    %437 = vmatprep.subr.mxu0 0.0
    %438 = vmatpush1.msra.mxu0 0.0
    %439 = vmatprep.subr.mxu0 0.0
    %440 = vmatpush1.msra.mxu0 0.0
    %441 = vmatprep.subr.mxu0 0.0
    %442 = vmatpush1.msra.mxu0 0.0
    %443 = vmatprep.subr.mxu0 0.0
    %444 = vmatpush1.msra.mxu0 0.0
    %445 = vmatprep.subr.mxu0 0.0
    %446 = vmatpush1.msra.mxu0 0.0
    %447 = vmatprep.subr.mxu0 0.0
    %448 = vmatpush1.msra.mxu0 0.0
    %449 = vmatprep.subr.mxu0 0.0
    %450 = vmatpush1.msra.mxu0 0.0
    %451 = vmatprep.subr.mxu0 0.0
    %452 = vmatpush1.msra.mxu0 0.0
    %453 = vmatprep.subr.mxu0 0.0
    %454 = vmatpush1.msra.mxu0 0.0
    %455 = vmatprep.subr.mxu0 0.0
    %456 = vmatpush1.msra.mxu0 0.0
    %457 = vmatprep.subr.mxu0 0.0
    %458 = vmatpush1.msra.mxu0 0.0
    %459 = vmatprep.subr.mxu0 0.0
    %460 = vmatpush1.msra.mxu0 0.0
    %461 = vmatprep.subr.mxu0 0.0
    %462 = vmatpush1.msra.mxu0 0.0
    %463 = vmatprep.subr.mxu0 0.0
    %464 = vmatpush1.msra.mxu0 0.0
    %465 = vmatprep.subr.mxu0 0.0
    %466 = vmatpush1.msra.mxu0 0.0
    %467 = vmatprep.subr.mxu0 0.0
    %468 = vmatpush1.msra.mxu0 0.0
    %469 = vmatprep.subr.mxu0 0.0
    %470 = vmatpush1.msra.mxu0 0.0
    %471 = vmatprep.subr.mxu0 0.0
    %472 = vmatpush1.msra.mxu0 0.0
    %473 = vmatprep.subr.mxu0 0.0
    %474 = vmatpush1.msra.mxu0 0.0
    %475 = vmatprep.subr.mxu0 0.0
    %476 = vmatpush1.msra.mxu0 0.0
    %477 = vmatprep.subr.mxu0 0.0
    %478 = vmatpush1.msra.mxu0 0.0
    %479 = vmatprep.subr.mxu0 0.0
    %480 = vmatpush1.msra.mxu0 0.0
    %481 = vmatprep.subr.mxu0 0.0
    %482 = vmatpush1.msra.mxu0 0.0
    %483 = vmatprep.subr.mxu0 0.0
    %484 = vmatpush1.msra.mxu0 0.0
    %485 = vmatprep.subr.mxu0 0.0
    %486 = vmatpush1.msra.mxu0 0.0
    %487 = vmatprep.subr.mxu0 0.0
    %488 = vmatpush1.msra.mxu0 0.0
    %489 = vmatprep.mubr.f32.mxu0 0.0
    %490 = vmatmul.mubr.f32.gmra.mrb[0].mxu0 %v421
    %v491 = vpop.f32.mrb[0].mxu0
    %v492 = vadd.f32 0.0, %v491
    %v493 = vpop.f32.mrb[0].mxu0
    %494 = vmatprep.mubr.f32.mxu0 0.0
    %495 = vmatmul.mubr.f32.gmra.mrb[0].mxu0 %v423
    %v496 = vpop.f32.mrb[0].mxu0
    %v497 = vadd.f32 0.0, %v496
    %v498 = vpop.f32.mrb[0].mxu0
    %499 = vdwg.mxu0
    %vm500 = vcmp.gt.f32.partialorder %v403, 0.0
    %vm501 = vcmp.gt.f32.partialorder %v408, 0.0
    %vm502 = vcmp.gt.f32.partialorder %v492, 0.0
    %vm503 = vcmp.gt.f32.partialorder %v497, 0.0
    %v504 = vmin.f32 %v403, 0.0
    %v505 = vmin.f32 %v408, 0.0
    %v506 = vmin.f32 %v492, 0.0
    %v507 = vmin.f32 %v497, 0.0
    %v508 = vmul.f32 %v504, 1.442695
    %v509 = vpow.pop %v508
    %v510 = vmul.f32 %v505, 1.442695
    %v511 = vpow.pop %v510
    %v512 = vmul.f32 %v506, 1.442695
    %v513 = vpow.pop %v512
    %v514 = vmul.f32 %v507, 1.442695
    %v515 = vpow.pop %v514
    %v516 = vsub.f32 %v509, 1.0
    %v517 = vsub.f32 %v511, 1.0
    %v518 = vsub.f32 %v513, 1.0
    %v519 = vsub.f32 %v515, 1.0
    %v520 = vsel %vm500, %v403, %v516
    %v521 = vsel %vm501, %v408, %v517
    %v522 = vsel %vm502, %v492, %v518
    %v523 = vsel %vm503, %v497, %v519
    %v524 = vld [vmem:[#allocation5 + $0x18] sm:$0xff]
    %v525 = vld [vmem:[#allocation5 + $0x20] sm:$0xff]
    %v526 = vld [vmem:[#allocation5 + $0x28] sm:$0x1]
    %v527 = vld [vmem:[#allocation5 + $0x30] sm:$0x1]
    %v529 = vsel %vm60, %v520, 0
    %v532 = vsel %vm60, %v521, 0
    %v535 = vsel %vm60, %v522, 0
    %v538 = vsel %vm60, %v523, 0
    %540 = vmatprep.subr.mxu0 0.0
    %541 = vmatpush1.msra.mxu0 %v524
    %542 = vmatprep.subr.mxu0 0.0
    %543 = vmatpush1.msra.mxu0 %v525
    %544 = vmatprep.subr.mxu0 0.0
    %545 = vmatpush1.msra.mxu0 0.0
    %546 = vmatprep.subr.mxu0 0.0
    %547 = vmatpush1.msra.mxu0 0.0
    %548 = vmatprep.subr.mxu0 0.0
    %549 = vmatpush1.msra.mxu0 0.0
    %550 = vmatprep.subr.mxu0 0.0
    %551 = vmatpush1.msra.mxu0 0.0
    %552 = vmatprep.subr.mxu0 0.0
    %553 = vmatpush1.msra.mxu0 0.0
    %554 = vmatprep.subr.mxu0 0.0
    %555 = vmatpush1.msra.mxu0 0.0
    %556 = vmatprep.subr.mxu0 0.0
    %557 = vmatpush1.msra.mxu0 0.0
    %558 = vmatprep.subr.mxu0 0.0
    %559 = vmatpush1.msra.mxu0 0.0
    %560 = vmatprep.subr.mxu0 0.0
    %561 = vmatpush1.msra.mxu0 0.0
    %562 = vmatprep.subr.mxu0 0.0
    %563 = vmatpush1.msra.mxu0 0.0
    %564 = vmatprep.subr.mxu0 0.0
    %565 = vmatpush1.msra.mxu0 0.0
    %566 = vmatprep.subr.mxu0 0.0
    %567 = vmatpush1.msra.mxu0 0.0
    %568 = vmatprep.subr.mxu0 0.0
    %569 = vmatpush1.msra.mxu0 0.0
    %570 = vmatprep.subr.mxu0 0.0
    %571 = vmatpush1.msra.mxu0 0.0
    %572 = vmatprep.subr.mxu0 0.0
    %573 = vmatpush1.msra.mxu0 0.0
    %574 = vmatprep.subr.mxu0 0.0
    %575 = vmatpush1.msra.mxu0 0.0
    %576 = vmatprep.subr.mxu0 0.0
    %577 = vmatpush1.msra.mxu0 0.0
    %578 = vmatprep.subr.mxu0 0.0
    %579 = vmatpush1.msra.mxu0 0.0
    %580 = vmatprep.subr.mxu0 0.0
    %581 = vmatpush1.msra.mxu0 0.0
    %582 = vmatprep.subr.mxu0 0.0
    %583 = vmatpush1.msra.mxu0 0.0
    %584 = vmatprep.subr.mxu0 0.0
    %585 = vmatpush1.msra.mxu0 0.0
    %586 = vmatprep.subr.mxu0 0.0
    %587 = vmatpush1.msra.mxu0 0.0
    %588 = vmatprep.subr.mxu0 0.0
    %589 = vmatpush1.msra.mxu0 0.0
    %590 = vmatprep.subr.mxu0 0.0
    %591 = vmatpush1.msra.mxu0 0.0
    %592 = vmatprep.subr.mxu0 0.0
    %593 = vmatpush1.msra.mxu0 0.0
    %594 = vmatprep.subr.mxu0 0.0
    %595 = vmatpush1.msra.mxu0 0.0
    %596 = vmatprep.subr.mxu0 0.0
    %597 = vmatpush1.msra.mxu0 0.0
    %598 = vmatprep.subr.mxu0 0.0
    %599 = vmatpush1.msra.mxu0 0.0
    %600 = vmatprep.subr.mxu0 0.0
    %601 = vmatpush1.msra.mxu0 0.0
    %602 = vmatprep.subr.mxu0 0.0
    %603 = vmatpush1.msra.mxu0 0.0
    %604 = vmatprep.mubr.f32.mxu0 0.0
    %605 = vmatmul.mubr.f32.gmra.mrb[0].mxu0 %v529
    %v606 = vpop.f32.mrb[0].mxu0
    %v607 = vadd.f32 0.0, %v606
    %v608 = vpop.f32.mrb[0].mxu0
    %609 = vmatprep.mubr.f32.mxu0 0.0
    %610 = vmatmul.mubr.f32.gmra.mrb[0].mxu0 %v532
    %v611 = vpop.f32.mrb[0].mxu0
    %v612 = vadd.f32 0.0, %v611
    %v613 = vpop.f32.mrb[0].mxu0
    %614 = vmatprep.mubr.f32.mxu0 0.0
    %615 = vmatmul.mubr.f32.gmra.mrb[0].mxu0 %v535
    %v616 = vpop.f32.mrb[0].mxu0
    %v617 = vadd.f32 0.0, %v616
    %v618 = vpop.f32.mrb[0].mxu0
    %619 = vmatprep.mubr.f32.mxu0 0.0
    %620 = vmatmul.mubr.f32.gmra.mrb[0].mxu0 %v538
    %v621 = vpop.f32.mrb[0].mxu0
    %v622 = vadd.f32 0.0, %v621
    %v623 = vpop.f32.mrb[0].mxu0
    %624 = vdwg.mxu0
    %v625 = vlaneseq
    %v626 = vshrl.u32 %v625, 7
    %v627 = vsub.s32 0, %v626
    %v628 = vrot.slane %v526, %v627
    %v629 = vmul.f32 %v607, %v628
    %v630 = vmul.f32 %v612, %v628
    %v631 = vmul.f32 %v617, %v628
    %v632 = vmul.f32 %v622, %v628
    %v633 = vsel %vm60, %v629, 0.0
    %634 = vadd.xlane.f32.xlu0 %v633
    %v635 = vpop.xlane.xlu0 %634
    %v636 = vsel %vm60, %v630, 0.0
    %637 = vadd.xlane.f32.xlu0 %v636
    %v638 = vpop.xlane.xlu0 %637
    %v639 = vsel %vm60, %v631, 0.0
    %640 = vadd.xlane.f32.xlu0 %v639
    %v641 = vpop.xlane.xlu0 %640
    %v642 = vsel %vm60, %v632, 0.0
    %643 = vadd.xlane.f32.xlu0 %v642
    %v644 = vpop.xlane.xlu0 %643
    %v646 = vsel %vm60, %v527, 0
    %v649 = vsel %vm60, %v607, 0
    %v652 = vsel %vm60, %v612, 0
    %v655 = vsel %vm60, %v617, 0
    %v658 = vsel %vm60, %v622, 0
    %660 = vmatprep.subr.mxu0 0.0
    %661 = vmatpush1.xpose.msra.mxu0 %v649
    %662 = vmatprep.subr.mxu0 0.0
    %663 = vmatpush1.xpose.msra.mxu0 %v652
    %664 = vmatprep.subr.mxu0 0.0
    %665 = vmatpush1.xpose.msra.mxu0 %v655
    %666 = vmatprep.subr.mxu0 0.0
    %667 = vmatpush1.xpose.msra.mxu0 %v658
    %668 = vmatprep.subr.mxu0 0.0
    %669 = vmatpush1.xpose.msra.mxu0 0.0
    %670 = vmatprep.subr.mxu0 0.0
    %671 = vmatpush1.xpose.msra.mxu0 0.0
    %672 = vmatprep.subr.mxu0 0.0
    %673 = vmatpush1.xpose.msra.mxu0 0.0
    %674 = vmatprep.subr.mxu0 0.0
    %675 = vmatpush1.xpose.msra.mxu0 0.0
    %676 = vmatprep.subr.mxu0 0.0
    %677 = vmatpush1.xpose.msra.mxu0 0.0
    %678 = vmatprep.subr.mxu0 0.0
    %679 = vmatpush1.xpose.msra.mxu0 0.0
    %680 = vmatprep.subr.mxu0 0.0
    %681 = vmatpush1.xpose.msra.mxu0 0.0
    %682 = vmatprep.subr.mxu0 0.0
    %683 = vmatpush1.xpose.msra.mxu0 0.0
    %684 = vmatprep.subr.mxu0 0.0
    %685 = vmatpush1.xpose.msra.mxu0 0.0
    %686 = vmatprep.subr.mxu0 0.0
    %687 = vmatpush1.xpose.msra.mxu0 0.0
    %688 = vmatprep.subr.mxu0 0.0
    %689 = vmatpush1.xpose.msra.mxu0 0.0
    %690 = vmatprep.subr.mxu0 0.0
    %691 = vmatpush1.xpose.msra.mxu0 0.0
    %692 = vmatprep.subr.mxu0 0.0
    %693 = vmatpush1.xpose.msra.mxu0 0.0
    %694 = vmatprep.subr.mxu0 0.0
    %695 = vmatpush1.xpose.msra.mxu0 0.0
    %696 = vmatprep.subr.mxu0 0.0
    %697 = vmatpush1.xpose.msra.mxu0 0.0
    %698 = vmatprep.subr.mxu0 0.0
    %699 = vmatpush1.xpose.msra.mxu0 0.0
    %700 = vmatprep.subr.mxu0 0.0
    %701 = vmatpush1.xpose.msra.mxu0 0.0
    %702 = vmatprep.subr.mxu0 0.0
    %703 = vmatpush1.xpose.msra.mxu0 0.0
    %704 = vmatprep.subr.mxu0 0.0
    %705 = vmatpush1.xpose.msra.mxu0 0.0
    %706 = vmatprep.subr.mxu0 0.0
    %707 = vmatpush1.xpose.msra.mxu0 0.0
    %708 = vmatprep.subr.mxu0 0.0
    %709 = vmatpush1.xpose.msra.mxu0 0.0
    %710 = vmatprep.subr.mxu0 0.0
    %711 = vmatpush1.xpose.msra.mxu0 0.0
    %712 = vmatprep.subr.mxu0 0.0
    %713 = vmatpush1.xpose.msra.mxu0 0.0
    %714 = vmatprep.subr.mxu0 0.0
    %715 = vmatpush1.xpose.msra.mxu0 0.0
    %716 = vmatprep.subr.mxu0 0.0
    %717 = vmatpush1.xpose.msra.mxu0 0.0
    %718 = vmatprep.subr.mxu0 0.0
    %719 = vmatpush1.xpose.msra.mxu0 0.0
    %720 = vmatprep.subr.mxu0 0.0
    %721 = vmatpush1.xpose.msra.mxu0 0.0
    %722 = vmatprep.subr.mxu0 0.0
    %723 = vmatpush1.xpose.msra.mxu0 0.0
    %724 = vmatprep.mubr.f32.mxu0 0.0
    %725 = vmatmul.mubr.f32.gmra.mrb[0].mxu0 %v646
    %v726 = vpop.f32.mrb[0].mxu0
    %v727 = vadd.f32 0.0, %v726
    %v728 = vpop.f32.mrb[0].mxu0
    %729 = vdwg.mxu0
    %v730 = vlaneseq
    %v731 = vshrl.u32 %v730, 7
    %v732 = vsub.s32 0, %v731
    %v733 = vrot.slane %v727, %v732
    %v734 = vadd.f32 %v635, %v733
    %v735 = vadd.f32 %v638, %v733
    %v736 = vadd.f32 %v641, %v733
    %v737 = vadd.f32 %v644, %v733
    %v738 = vsel %vm60, %v734, %v736
    %v739 = vsel %vm60, %v735, %v737
    %v740 = vmul.f32 %v738, 0.2
    %v741 = vmul.f32 %v739, 0.2
    %v742 = vmax.f32 %v738, %v740
    %v743 = vmax.f32 %v739, %v741
    %v744 = vadd.f32 %v742, %v65
    %v745 = vadd.f32 %v743, %v66
    %v746 = vsel %vm60, %v744, -inf
    %747 = vmax.xlane.f32.xlu0 %v746
    %v748 = vpop.xlane.xlu0 %747
    %v749 = vsel %vm60, %v745, -inf
    %750 = vmax.xlane.f32.xlu0 %v749
    %v751 = vpop.xlane.xlu0 %750
    %v752 = vsel %vm289, %v744, -inf
    %753 = vmax.xlane.f32.xlu0 %v752
    %v754 = vpop.xlane.xlu0 %753
    %v755 = vsel %vm289, %v745, -inf
    %756 = vmax.xlane.f32.xlu0 %v755
    %v757 = vpop.xlane.xlu0 %756
    %v758 = vsub.f32 %v744, %v748
    %v759 = vsub.f32 %v745, %v751
    %v760 = vsub.f32 %v744, %v754
    %v761 = vsub.f32 %v745, %v757
    %v762 = vsel %vm60, %v758, %v760
    %v763 = vsel %vm60, %v759, %v761
    %v764 = vmul.f32 %v762, 1.442695
    %v765 = vpow.pop %v764
    %v766 = vmul.f32 %v763, 1.442695
    %v767 = vpow.pop %v766
    %v768 = vsel %vm60, %v765, 0.0
    %769 = vadd.xlane.f32.xlu0 %v768
    %v770 = vpop.xlane.xlu0 %769
    %v771 = vsel %vm60, %v767, 0.0
    %772 = vadd.xlane.f32.xlu0 %v771
    %v773 = vpop.xlane.xlu0 %772
    %776 = vrot.lane.b32.xlu0 %v765, 112
    %v777 = vpop.permute.xlu0 %776
    %778 = vrot.lane.b32.xlu0 %v767, 112
    %v779 = vpop.permute.xlu0 %778
    %v782 = vsel %vm60, %v777, 0.0
    %783 = vadd.xlane.f32.xlu0 %v782
    %v784 = vpop.xlane.xlu0 %783
    %v785 = vsel %vm60, %v779, 0.0
    %786 = vadd.xlane.f32.xlu0 %v785
    %v787 = vpop.xlane.xlu0 %786
    %v788 = vrcp.pop %v770
    %v789 = vmul.f32 %v765, %v788
    %v790 = vrcp.pop %v773
    %v791 = vmul.f32 %v767, %v790
    %v793 = vsel %vm60, %v789, 0
    %v796 = vsel %vm60, %v791, 0
    %798 = vmatprep.subr.mxu0 0.0
    %799 = vmatpush1.msra.mxu0 %v607
    %800 = vmatprep.subr.mxu0 0.0
    %801 = vmatpush1.msra.mxu0 %v612
    %802 = vmatprep.subr.mxu0 0.0
    %803 = vmatpush1.msra.mxu0 0.0
    %804 = vmatprep.subr.mxu0 0.0
    %805 = vmatpush1.msra.mxu0 0.0
    %806 = vmatprep.subr.mxu0 0.0
    %807 = vmatpush1.msra.mxu0 0.0
    %808 = vmatprep.subr.mxu0 0.0
    %809 = vmatpush1.msra.mxu0 0.0
    %810 = vmatprep.subr.mxu0 0.0
    %811 = vmatpush1.msra.mxu0 0.0
    %812 = vmatprep.subr.mxu0 0.0
    %813 = vmatpush1.msra.mxu0 0.0
    %814 = vmatprep.subr.mxu0 0.0
    %815 = vmatpush1.msra.mxu0 0.0
    %816 = vmatprep.subr.mxu0 0.0
    %817 = vmatpush1.msra.mxu0 0.0
    %818 = vmatprep.subr.mxu0 0.0
    %819 = vmatpush1.msra.mxu0 0.0
    %820 = vmatprep.subr.mxu0 0.0
    %821 = vmatpush1.msra.mxu0 0.0
    %822 = vmatprep.subr.mxu0 0.0
    %823 = vmatpush1.msra.mxu0 0.0
    %824 = vmatprep.subr.mxu0 0.0
    %825 = vmatpush1.msra.mxu0 0.0
    %826 = vmatprep.subr.mxu0 0.0
    %827 = vmatpush1.msra.mxu0 0.0
    %828 = vmatprep.subr.mxu0 0.0
    %829 = vmatpush1.msra.mxu0 0.0
    %830 = vmatprep.subr.mxu0 0.0
    %831 = vmatpush1.msra.mxu0 0.0
    %832 = vmatprep.subr.mxu0 0.0
    %833 = vmatpush1.msra.mxu0 0.0
    %834 = vmatprep.subr.mxu0 0.0
    %835 = vmatpush1.msra.mxu0 0.0
    %836 = vmatprep.subr.mxu0 0.0
    %837 = vmatpush1.msra.mxu0 0.0
    %838 = vmatprep.subr.mxu0 0.0
    %839 = vmatpush1.msra.mxu0 0.0
    %840 = vmatprep.subr.mxu0 0.0
    %841 = vmatpush1.msra.mxu0 0.0
    %842 = vmatprep.subr.mxu0 0.0
    %843 = vmatpush1.msra.mxu0 0.0
    %844 = vmatprep.subr.mxu0 0.0
    %845 = vmatpush1.msra.mxu0 0.0
    %846 = vmatprep.subr.mxu0 0.0
    %847 = vmatpush1.msra.mxu0 0.0
    %848 = vmatprep.subr.mxu0 0.0
    %849 = vmatpush1.msra.mxu0 0.0
    %850 = vmatprep.subr.mxu0 0.0
    %851 = vmatpush1.msra.mxu0 0.0
    %852 = vmatprep.subr.mxu0 0.0
    %853 = vmatpush1.msra.mxu0 0.0
    %854 = vmatprep.subr.mxu0 0.0
    %855 = vmatpush1.msra.mxu0 0.0
    %856 = vmatprep.subr.mxu0 0.0
    %857 = vmatpush1.msra.mxu0 0.0
    %858 = vmatprep.subr.mxu0 0.0
    %859 = vmatpush1.msra.mxu0 0.0
    %860 = vmatprep.subr.mxu0 0.0
    %861 = vmatpush1.msra.mxu0 0.0
    %862 = vmatprep.mubr.f32.mxu0 0.0
    %863 = vmatmul.mubr.f32.gmra.mrb[0].mxu0 %v793
    %v864 = vpop.f32.mrb[0].mxu0
    %v865 = vadd.f32 0.0, %v864
    %v866 = vpop.f32.mrb[0].mxu0
    %867 = vmatprep.mubr.f32.mxu0 0.0
    %868 = vmatmul.mubr.f32.gmra.mrb[0].mxu0 %v796
    %v869 = vpop.f32.mrb[0].mxu0
    %v870 = vadd.f32 0.0, %v869
    %v871 = vpop.f32.mrb[0].mxu0
    %872 = vdwg.mxu0
    %v873 = vrcp.pop %v784
    %v874 = vmul.f32 %v765, %v873
    %v875 = vrcp.pop %v787
    %v876 = vmul.f32 %v767, %v875
    %879 = vrot.lane.b32.xlu0 %v874, 112
    %v880 = vpop.permute.xlu0 %879
    %881 = vrot.lane.b32.xlu0 %v876, 112
    %v882 = vpop.permute.xlu0 %881
    %v883 = vsel %vm60, %v880, 0
    %v885 = vsel %vm60, %v882, 0
    %887 = vmatprep.subr.mxu0 0.0
    %888 = vmatpush1.msra.mxu0 %v617
    %889 = vmatprep.subr.mxu0 0.0
    %890 = vmatpush1.msra.mxu0 %v622
    %891 = vmatprep.subr.mxu0 0.0
    %892 = vmatpush1.msra.mxu0 0.0
    %893 = vmatprep.subr.mxu0 0.0
    %894 = vmatpush1.msra.mxu0 0.0
    %895 = vmatprep.subr.mxu0 0.0
    %896 = vmatpush1.msra.mxu0 0.0
    %897 = vmatprep.subr.mxu0 0.0
    %898 = vmatpush1.msra.mxu0 0.0
    %899 = vmatprep.subr.mxu0 0.0
    %900 = vmatpush1.msra.mxu0 0.0
    %901 = vmatprep.subr.mxu0 0.0
    %902 = vmatpush1.msra.mxu0 0.0
    %903 = vmatprep.subr.mxu0 0.0
    %904 = vmatpush1.msra.mxu0 0.0
    %905 = vmatprep.subr.mxu0 0.0
    %906 = vmatpush1.msra.mxu0 0.0
    %907 = vmatprep.subr.mxu0 0.0
    %908 = vmatpush1.msra.mxu0 0.0
    %909 = vmatprep.subr.mxu0 0.0
    %910 = vmatpush1.msra.mxu0 0.0
    %911 = vmatprep.subr.mxu0 0.0
    %912 = vmatpush1.msra.mxu0 0.0
    %913 = vmatprep.subr.mxu0 0.0
    %914 = vmatpush1.msra.mxu0 0.0
    %915 = vmatprep.subr.mxu0 0.0
    %916 = vmatpush1.msra.mxu0 0.0
    %917 = vmatprep.subr.mxu0 0.0
    %918 = vmatpush1.msra.mxu0 0.0
    %919 = vmatprep.subr.mxu0 0.0
    %920 = vmatpush1.msra.mxu0 0.0
    %921 = vmatprep.subr.mxu0 0.0
    %922 = vmatpush1.msra.mxu0 0.0
    %923 = vmatprep.subr.mxu0 0.0
    %924 = vmatpush1.msra.mxu0 0.0
    %925 = vmatprep.subr.mxu0 0.0
    %926 = vmatpush1.msra.mxu0 0.0
    %927 = vmatprep.subr.mxu0 0.0
    %928 = vmatpush1.msra.mxu0 0.0
    %929 = vmatprep.subr.mxu0 0.0
    %930 = vmatpush1.msra.mxu0 0.0
    %931 = vmatprep.subr.mxu0 0.0
    %932 = vmatpush1.msra.mxu0 0.0
    %933 = vmatprep.subr.mxu0 0.0
    %934 = vmatpush1.msra.mxu0 0.0
    %935 = vmatprep.subr.mxu0 0.0
    %936 = vmatpush1.msra.mxu0 0.0
    %937 = vmatprep.subr.mxu0 0.0
    %938 = vmatpush1.msra.mxu0 0.0
    %939 = vmatprep.subr.mxu0 0.0
    %940 = vmatpush1.msra.mxu0 0.0
    %941 = vmatprep.subr.mxu0 0.0
    %942 = vmatpush1.msra.mxu0 0.0
    %943 = vmatprep.subr.mxu0 0.0
    %944 = vmatpush1.msra.mxu0 0.0
    %945 = vmatprep.subr.mxu0 0.0
    %946 = vmatpush1.msra.mxu0 0.0
    %947 = vmatprep.subr.mxu0 0.0
    %948 = vmatpush1.msra.mxu0 0.0
    %949 = vmatprep.subr.mxu0 0.0
    %950 = vmatpush1.msra.mxu0 0.0
    %951 = vmatprep.mubr.f32.mxu0 0.0
    %952 = vmatmul.mubr.f32.gmra.mrb[0].mxu0 %v883
    %v953 = vpop.f32.mrb[0].mxu0
    %v954 = vadd.f32 0.0, %v953
    %v955 = vpop.f32.mrb[0].mxu0
    %956 = vmatprep.mubr.f32.mxu0 0.0
    %957 = vmatmul.mubr.f32.gmra.mrb[0].mxu0 %v885
    %v958 = vpop.f32.mrb[0].mxu0
    %v959 = vadd.f32 0.0, %v958
    %v960 = vpop.f32.mrb[0].mxu0
    %961 = vdwg.mxu0
    %vm962 = vcmp.gt.f32.partialorder %v865, 0.0
    %vm963 = vcmp.gt.f32.partialorder %v870, 0.0
    %vm964 = vcmp.gt.f32.partialorder %v954, 0.0
    %vm965 = vcmp.gt.f32.partialorder %v959, 0.0
    %v966 = vmin.f32 %v865, 0.0
    %v967 = vmin.f32 %v870, 0.0
    %v968 = vmin.f32 %v954, 0.0
    %v969 = vmin.f32 %v959, 0.0
    %v970 = vmul.f32 %v966, 1.442695
    %v971 = vpow.pop %v970
    %v972 = vmul.f32 %v967, 1.442695
    %v973 = vpow.pop %v972
    %v974 = vmul.f32 %v968, 1.442695
    %v975 = vpow.pop %v974
    %v976 = vmul.f32 %v969, 1.442695
    %v977 = vpow.pop %v976
    %v978 = vsub.f32 %v971, 1.0
    %v979 = vsub.f32 %v973, 1.0
    %v980 = vsub.f32 %v975, 1.0
    %v981 = vsub.f32 %v977, 1.0
    %v982 = vsel %vm962, %v865, %v978
    %v983 = vsel %vm963, %v870, %v979
    %v984 = vsel %vm964, %v954, %v980
    %v985 = vsel %vm965, %v959, %v981
    %v986 = vsub.f32 %v984, %v982
    %v987 = vsub.f32 %v985, %v983
    %v988 = vsel %vm60, %v986, 0.0
    %v989 = vsel %vm60, %v987, 0.0
    %v990 = vadd.f32 %v988, %v989
    %v991 = vrot.slane %v990, 4
    %v992 = vadd.f32 %v990, %v991
    %v993 = vrot.slane %v992, 2
    %v994 = vadd.f32 %v992, %v993
    %v995 = vrot.slane %v994, 1
    %v996 = vadd.f32 %v994, %v995
    %v997 = vrcp.pop 16.0
    %v998 = vmul.f32 %v996, %v997
    %v999 = vld [vmem:[#allocation5 + $0x38] sm:$0xff]
    %v1000 = vld [vmem:[#allocation5 + $0x40] sm:$0xff]
    %v1001 = vld [vmem:[#allocation5 + $0x48] sm:$0x1]
    %v1003 = vsel %vm60, %v998, 0
    %1005 = vmatprep.subr.mxu0 0.0
    %1006 = vmatpush1.msra.mxu0 %v999
    %1007 = vmatprep.subr.mxu0 0.0
    %1008 = vmatpush1.msra.mxu0 %v1000
    %1009 = vmatprep.subr.mxu0 0.0
    %1010 = vmatpush1.msra.mxu0 0.0
    %1011 = vmatprep.subr.mxu0 0.0
    %1012 = vmatpush1.msra.mxu0 0.0
    %1013 = vmatprep.subr.mxu0 0.0
    %1014 = vmatpush1.msra.mxu0 0.0
    %1015 = vmatprep.subr.mxu0 0.0
    %1016 = vmatpush1.msra.mxu0 0.0
    %1017 = vmatprep.subr.mxu0 0.0
    %1018 = vmatpush1.msra.mxu0 0.0
    %1019 = vmatprep.subr.mxu0 0.0
    %1020 = vmatpush1.msra.mxu0 0.0
    %1021 = vmatprep.subr.mxu0 0.0
    %1022 = vmatpush1.msra.mxu0 0.0
    %1023 = vmatprep.subr.mxu0 0.0
    %1024 = vmatpush1.msra.mxu0 0.0
    %1025 = vmatprep.subr.mxu0 0.0
    %1026 = vmatpush1.msra.mxu0 0.0
    %1027 = vmatprep.subr.mxu0 0.0
    %1028 = vmatpush1.msra.mxu0 0.0
    %1029 = vmatprep.subr.mxu0 0.0
    %1030 = vmatpush1.msra.mxu0 0.0
    %1031 = vmatprep.subr.mxu0 0.0
    %1032 = vmatpush1.msra.mxu0 0.0
    %1033 = vmatprep.subr.mxu0 0.0
    %1034 = vmatpush1.msra.mxu0 0.0
    %1035 = vmatprep.subr.mxu0 0.0
    %1036 = vmatpush1.msra.mxu0 0.0
    %1037 = vmatprep.subr.mxu0 0.0
    %1038 = vmatpush1.msra.mxu0 0.0
    %1039 = vmatprep.subr.mxu0 0.0
    %1040 = vmatpush1.msra.mxu0 0.0
    %1041 = vmatprep.subr.mxu0 0.0
    %1042 = vmatpush1.msra.mxu0 0.0
    %1043 = vmatprep.subr.mxu0 0.0
    %1044 = vmatpush1.msra.mxu0 0.0
    %1045 = vmatprep.subr.mxu0 0.0
    %1046 = vmatpush1.msra.mxu0 0.0
    %1047 = vmatprep.subr.mxu0 0.0
    %1048 = vmatpush1.msra.mxu0 0.0
    %1049 = vmatprep.subr.mxu0 0.0
    %1050 = vmatpush1.msra.mxu0 0.0
    %1051 = vmatprep.subr.mxu0 0.0
    %1052 = vmatpush1.msra.mxu0 0.0
    %1053 = vmatprep.subr.mxu0 0.0
    %1054 = vmatpush1.msra.mxu0 0.0
    %1055 = vmatprep.subr.mxu0 0.0
    %1056 = vmatpush1.msra.mxu0 0.0
    %1057 = vmatprep.subr.mxu0 0.0
    %1058 = vmatpush1.msra.mxu0 0.0
    %1059 = vmatprep.subr.mxu0 0.0
    %1060 = vmatpush1.msra.mxu0 0.0
    %1061 = vmatprep.subr.mxu0 0.0
    %1062 = vmatpush1.msra.mxu0 0.0
    %1063 = vmatprep.subr.mxu0 0.0
    %1064 = vmatpush1.msra.mxu0 0.0
    %1065 = vmatprep.subr.mxu0 0.0
    %1066 = vmatpush1.msra.mxu0 0.0
    %1067 = vmatprep.subr.mxu0 0.0
    %1068 = vmatpush1.msra.mxu0 0.0
    %1069 = vmatprep.mubr.f32.mxu0 0.0
    %1070 = vmatmul.mubr.f32.gmra.mrb[0].mxu0 %v1003
    %v1071 = vpop.f32.mrb[0].mxu0
    %v1072 = vadd.f32 %v1001, %v1071
    %v1073 = vpop.f32.mrb[0].mxu0
    %1074 = vdwg.mxu0
    %v1075 = vmax.f32 %v1072, 0.0
    %v1076 = vld [vmem:[#allocation5 + $0x50] sm:$0xff]
    %v1077 = vld [vmem:[#allocation5 + $0x58] sm:$0xff]
    %v1078 = vld [vmem:[#allocation5 + $0x60] sm:$0xff]
    %v1079 = vld [vmem:[#allocation5 + $0x68] sm:$0xff]
    %v1080 = vld [vmem:[#allocation5 + $0x70] sm:$0x1]
    %vm1081 = vcmask 261120
    %v1083 = vsel %vm1081, %v1075, 0
    %1085 = vmatprep.subr.mxu0 0.0
    %1086 = vmatpush1.msra.mxu0 %v1076
    %1087 = vmatprep.subr.mxu0 0.0
    %1088 = vmatpush1.msra.mxu0 %v1077
    %1089 = vmatprep.subr.mxu0 0.0
    %1090 = vmatpush1.msra.mxu0 %v1078
    %1091 = vmatprep.subr.mxu0 0.0
    %1092 = vmatpush1.msra.mxu0 %v1079
    %1093 = vmatprep.subr.mxu0 0.0
    %1094 = vmatpush1.msra.mxu0 0.0
    %1095 = vmatprep.subr.mxu0 0.0
    %1096 = vmatpush1.msra.mxu0 0.0
    %1097 = vmatprep.subr.mxu0 0.0
    %1098 = vmatpush1.msra.mxu0 0.0
    %1099 = vmatprep.subr.mxu0 0.0
    %1100 = vmatpush1.msra.mxu0 0.0
    %1101 = vmatprep.subr.mxu0 0.0
    %1102 = vmatpush1.msra.mxu0 0.0
    %1103 = vmatprep.subr.mxu0 0.0
    %1104 = vmatpush1.msra.mxu0 0.0
    %1105 = vmatprep.subr.mxu0 0.0
    %1106 = vmatpush1.msra.mxu0 0.0
    %1107 = vmatprep.subr.mxu0 0.0
    %1108 = vmatpush1.msra.mxu0 0.0
    %1109 = vmatprep.subr.mxu0 0.0
    %1110 = vmatpush1.msra.mxu0 0.0
    %1111 = vmatprep.subr.mxu0 0.0
    %1112 = vmatpush1.msra.mxu0 0.0
    %1113 = vmatprep.subr.mxu0 0.0
    %1114 = vmatpush1.msra.mxu0 0.0
    %1115 = vmatprep.subr.mxu0 0.0
    %1116 = vmatpush1.msra.mxu0 0.0
    %1117 = vmatprep.subr.mxu0 0.0
    %1118 = vmatpush1.msra.mxu0 0.0
    %1119 = vmatprep.subr.mxu0 0.0
    %1120 = vmatpush1.msra.mxu0 0.0
    %1121 = vmatprep.subr.mxu0 0.0
    %1122 = vmatpush1.msra.mxu0 0.0
    %1123 = vmatprep.subr.mxu0 0.0
    %1124 = vmatpush1.msra.mxu0 0.0
    %1125 = vmatprep.subr.mxu0 0.0
    %1126 = vmatpush1.msra.mxu0 0.0
    %1127 = vmatprep.subr.mxu0 0.0
    %1128 = vmatpush1.msra.mxu0 0.0
    %1129 = vmatprep.subr.mxu0 0.0
    %1130 = vmatpush1.msra.mxu0 0.0
    %1131 = vmatprep.subr.mxu0 0.0
    %1132 = vmatpush1.msra.mxu0 0.0
    %1133 = vmatprep.subr.mxu0 0.0
    %1134 = vmatpush1.msra.mxu0 0.0
    %1135 = vmatprep.subr.mxu0 0.0
    %1136 = vmatpush1.msra.mxu0 0.0
    %1137 = vmatprep.subr.mxu0 0.0
    %1138 = vmatpush1.msra.mxu0 0.0
    %1139 = vmatprep.subr.mxu0 0.0
    %1140 = vmatpush1.msra.mxu0 0.0
    %1141 = vmatprep.subr.mxu0 0.0
    %1142 = vmatpush1.msra.mxu0 0.0
    %1143 = vmatprep.subr.mxu0 0.0
    %1144 = vmatpush1.msra.mxu0 0.0
    %1145 = vmatprep.subr.mxu0 0.0
    %1146 = vmatpush1.msra.mxu0 0.0
    %1147 = vmatprep.subr.mxu0 0.0
    %1148 = vmatpush1.msra.mxu0 0.0
    %1149 = vmatprep.mubr.f32.mxu0 0.0
    %1150 = vmatmul.mubr.f32.gmra.mrb[0].mxu0 %v1083
    %v1151 = vpop.f32.mrb[0].mxu0
    %v1152 = vadd.f32 %v1080, %v1151
    %v1153 = vpop.f32.mrb[0].mxu0
    %1154 = vdwg.mxu0
    %v1155 = vmax.f32 %v1152, 0.0
    %v1156 = vld [vmem:[#allocation5 + $0x78] sm:$0xff]
    %v1157 = vld [vmem:[#allocation5 + $0x80] sm:$0xff]
    %v1158 = vld [vmem:[#allocation5 + $0x88] sm:$0xff]
    %v1159 = vld [vmem:[#allocation5 + $0x90] sm:$0xff]
    %v1160 = vld [vmem:[#allocation5 + $0x98] sm:$0x1]
    %v1162 = vsel %vm1081, %v1155, 0
    %1164 = vmatprep.subr.mxu0 0.0
    %1165 = vmatpush1.msra.mxu0 %v1156
    %1166 = vmatprep.subr.mxu0 0.0
    %1167 = vmatpush1.msra.mxu0 %v1157
    %1168 = vmatprep.subr.mxu0 0.0
    %1169 = vmatpush1.msra.mxu0 %v1158
    %1170 = vmatprep.subr.mxu0 0.0
    %1171 = vmatpush1.msra.mxu0 %v1159
    %1172 = vmatprep.subr.mxu0 0.0
    %1173 = vmatpush1.msra.mxu0 0.0
    %1174 = vmatprep.subr.mxu0 0.0
    %1175 = vmatpush1.msra.mxu0 0.0
    %1176 = vmatprep.subr.mxu0 0.0
    %1177 = vmatpush1.msra.mxu0 0.0
    %1178 = vmatprep.subr.mxu0 0.0
    %1179 = vmatpush1.msra.mxu0 0.0
    %1180 = vmatprep.subr.mxu0 0.0
    %1181 = vmatpush1.msra.mxu0 0.0
    %1182 = vmatprep.subr.mxu0 0.0
    %1183 = vmatpush1.msra.mxu0 0.0
    %1184 = vmatprep.subr.mxu0 0.0
    %1185 = vmatpush1.msra.mxu0 0.0
    %1186 = vmatprep.subr.mxu0 0.0
    %1187 = vmatpush1.msra.mxu0 0.0
    %1188 = vmatprep.subr.mxu0 0.0
    %1189 = vmatpush1.msra.mxu0 0.0
    %1190 = vmatprep.subr.mxu0 0.0
    %1191 = vmatpush1.msra.mxu0 0.0
    %1192 = vmatprep.subr.mxu0 0.0
    %1193 = vmatpush1.msra.mxu0 0.0
    %1194 = vmatprep.subr.mxu0 0.0
    %1195 = vmatpush1.msra.mxu0 0.0
    %1196 = vmatprep.subr.mxu0 0.0
    %1197 = vmatpush1.msra.mxu0 0.0
    %1198 = vmatprep.subr.mxu0 0.0
    %1199 = vmatpush1.msra.mxu0 0.0
    %1200 = vmatprep.subr.mxu0 0.0
    %1201 = vmatpush1.msra.mxu0 0.0
    %1202 = vmatprep.subr.mxu0 0.0
    %1203 = vmatpush1.msra.mxu0 0.0
    %1204 = vmatprep.subr.mxu0 0.0
    %1205 = vmatpush1.msra.mxu0 0.0
    %1206 = vmatprep.subr.mxu0 0.0
    %1207 = vmatpush1.msra.mxu0 0.0
    %1208 = vmatprep.subr.mxu0 0.0
    %1209 = vmatpush1.msra.mxu0 0.0
    %1210 = vmatprep.subr.mxu0 0.0
    %1211 = vmatpush1.msra.mxu0 0.0
    %1212 = vmatprep.subr.mxu0 0.0
    %1213 = vmatpush1.msra.mxu0 0.0
    %1214 = vmatprep.subr.mxu0 0.0
    %1215 = vmatpush1.msra.mxu0 0.0
    %1216 = vmatprep.subr.mxu0 0.0
    %1217 = vmatpush1.msra.mxu0 0.0
    %1218 = vmatprep.subr.mxu0 0.0
    %1219 = vmatpush1.msra.mxu0 0.0
    %1220 = vmatprep.subr.mxu0 0.0
    %1221 = vmatpush1.msra.mxu0 0.0
    %1222 = vmatprep.subr.mxu0 0.0
    %1223 = vmatpush1.msra.mxu0 0.0
    %1224 = vmatprep.subr.mxu0 0.0
    %1225 = vmatpush1.msra.mxu0 0.0
    %1226 = vmatprep.subr.mxu0 0.0
    %1227 = vmatpush1.msra.mxu0 0.0
    %1228 = vmatprep.mubr.f32.mxu0 0.0
    %1229 = vmatmul.mubr.f32.gmra.mrb[0].mxu0 %v1162
    %v1230 = vpop.f32.mrb[0].mxu0
    %v1231 = vadd.f32 %v1160, %v1230
    %v1232 = vpop.f32.mrb[0].mxu0
    %1233 = vdwg.mxu0
    %vm1234 = vcmask 1040384
    %v1235 = vsel %vm1234, %v1231, -inf
    %1236 = vmax.xlane.f32.xlu0 %v1235
    %v1237 = vpop.xlane.xlu0 %1236
    %v1238 = vsub.f32 %v1231, %v1237
    %v1239 = vmul.f32 %v1238, 1.442695
    %v1240 = vpow.pop %v1239
    %v1241 = vsel %vm1234, %v1240, 0.0
    %1242 = vadd.xlane.f32.xlu0 %v1241
    %v1243 = vpop.xlane.xlu0 %1242
    %v1244 = vrcp.pop %v1243
    %v1245 = vmul.f32 %v1240, %v1244
    %1246 = vst [vmem:[#allocation7] sm:$0x1] %v1245
    // Predicated region
    $region26: #{gagan_forward.1} parent=1 // pred_check
      _
    $region27: #{gagan_forward.1} parent=1 // pred_check_branch
      %1248 = sbr.rel (0) target = $region29
    $region28: #{gagan_forward.1} parent=1 // pred_region
      %s1250 = ssub.s32 16, 16
      %1251 = vsyncadd [#allocation4], %s1250
      %s1253 = sshll.u32 [#allocation7], 4
      %s1254 = int_to_ptr.vmem [resolvable:$true] %s1253
      %1256 = dma.vmem_to_hbm [thread:$0]  %s1254, 16, %s4, [#allocation4]
    $region29: #{gagan_forward.1} parent=1 // pred_fallthru
      _
    // Predicated region
    $region30: #{gagan_forward.1} parent=1 // pred_check
      _
    $region31: #{gagan_forward.1} parent=1 // pred_check_branch
      %1258 = sbr.rel (0) target = $region33
    $region32: #{gagan_forward.1} parent=1 // pred_region
      %1259 = dma.done [#allocation4], 16
    $region33: #{gagan_forward.1} parent=1 // pred_fallthru
      _
    %1260 = vsyncpa [#allocation3], 1
    %1261 = vsyncpa [#allocation6], 1
    %1262 = vsyncpa [#allocation4], 1

</llo_original>
